<compile_context>
chip_gen: v7x
topology: tpu7x:2x2x1
jax: 0.10.0
libtpu: 0.0.40
codegen_flags: <defaults>
</compile_context>

<pallas_src>
import math
import functools

import jax
import jax.numpy as jnp
from jax.experimental import pallas as pl
from jax.experimental.pallas import tpu as pltpu


def _layernorm(x, gamma, beta, eps=1e-5):
    # x: (T, D) f32, gamma/beta: (1, D) f32
    mu = jnp.mean(x, axis=-1, keepdims=True)
    var = jnp.mean((x - mu) ** 2, axis=-1, keepdims=True)
    return (x - mu) * jax.lax.rsqrt(var + eps) * gamma + beta


def encoder_layer_kernel(
    xq_ref,                      # (1, tq, D)   query-row tile of src
    xkv_ref,                     # (1, tkv, D)  key/value-row tile of src
    ln1_ref, ln2_ref,            # (2, D)       row0 = gamma, row1 = beta
    wq_ref,                      # (D, D)   bf16
    wkv_ref,                     # (D, 2D)  bf16   (Wk | Wv fused)
    bqkv_ref,                    # (1, 3D)  f32    (bq | bk | bv)
    wo_ref, bo_ref,              # (D, D) bf16, (1, D) f32
    w1_ref, b1_ref,              # (D, F) bf16, (1, F) f32
    w2_ref, b2_ref,              # (F, D) bf16, (1, D) f32
    out_ref,                     # (1, tq, D)
    q_sc,                        # (nhead, tq, hd) bf16   cached scaled Q
    m_sc, l_sc,                  # (nhead, tq, 1)  f32    online-softmax state
    acc_sc,                      # (nhead, tq, hd) f32    attention accumulator
    *, nhead, head_dim, d_model, ffn_chunk, n_ffn_chunks,
):
    ki = pl.program_id(2)
    last_kv = pl.num_programs(2) - 1

    D = d_model
    cdt = jnp.bfloat16                       # dtype fed to the MXU
    scale = 1.0 / math.sqrt(head_dim)

    ln1_g = ln1_ref[0:1, :]                  # (1, D)
    ln1_b = ln1_ref[1:2, :]

    # ---- ki == 0: cache scaled Q for this query tile, reset softmax state --
    @pl.when(ki == 0)
    def _init():
        xq = xq_ref[0].astype(jnp.float32)                       # (tq, D)
        x2q = _layernorm(xq, ln1_g, ln1_b)
        q = jnp.dot(x2q.astype(cdt), wq_ref[...],
                    preferred_element_type=jnp.float32)
        q = (q + bqkv_ref[0:1, 0:D]) * scale                     # fold 1/sqrt(hd)
        tq = q.shape[0]
        q_sc[...] = jnp.transpose(
            q.reshape(tq, nhead, head_dim), (1, 0, 2)).astype(cdt)
        m_sc[...] = jnp.full(m_sc.shape, -jnp.inf, dtype=m_sc.dtype)
        l_sc[...] = jnp.zeros(l_sc.shape, dtype=l_sc.dtype)
        acc_sc[...] = jnp.zeros(acc_sc.shape, dtype=acc_sc.dtype)

    # ---- every kv step: fused K/V projection + online-softmax update -------
    xkv = xkv_ref[0].astype(jnp.float32)                         # (tkv, D)
    x2kv = _layernorm(xkv, ln1_g, ln1_b)
    kv = jnp.dot(x2kv.astype(cdt), wkv_ref[...],
                 preferred_element_type=jnp.float32)             # (tkv, 2D)
    kv = kv + bqkv_ref[0:1, D:3 * D]
    tkv = kv.shape[0]
    k_h = jnp.transpose(kv[:, 0:D].reshape(tkv, nhead, head_dim),
                        (1, 0, 2)).astype(cdt)                   # (h, tkv, hd)
    v_h = jnp.transpose(kv[:, D:2 * D].reshape(tkv, nhead, head_dim),
                        (1, 0, 2)).astype(cdt)

    s = jnp.einsum('hqd,hkd->hqk', q_sc[...], k_h,
                   preferred_element_type=jnp.float32)           # (h, tq, tkv)
    m_new = jnp.maximum(m_sc[...], jnp.max(s, axis=-1, keepdims=True))
    alpha = jnp.exp(m_sc[...] - m_new)
    p = jnp.exp(s - m_new)
    l_sc[...] = alpha * l_sc[...] + jnp.sum(p, axis=-1, keepdims=True)
    acc_sc[...] = alpha * acc_sc[...] + jnp.einsum(
        'hqk,hkd->hqd', p.astype(cdt), v_h,
        preferred_element_type=jnp.float32)
    m_sc[...] = m_new

    # ---- last kv step: out-proj + residual + LN2 + chunked FFN + residual --
    @pl.when(ki == last_kv)
    def _finalize():
        attn = acc_sc[...] * pl.reciprocal(l_sc[...], approx=True)  # (h, tq, hd)
        tq = attn.shape[1]
        attn2 = jnp.transpose(attn, (1, 0, 2)).reshape(tq, D).astype(cdt)
        attn_proj = jnp.dot(attn2, wo_ref[...],
                            preferred_element_type=jnp.float32) + bo_ref[...]

        x = xq_ref[0].astype(jnp.float32) + attn_proj            # dropout1 = id

        ln2_g = ln2_ref[0:1, :]
        ln2_b = ln2_ref[1:2, :]
        x2 = _layernorm(x, ln2_g, ln2_b).astype(cdt)

        ffn = jnp.zeros((tq, D), jnp.float32)
        for c in range(n_ffn_chunks):                            # static loop
            lo = c * ffn_chunk
            hid = jnp.dot(x2, w1_ref[:, lo:lo + ffn_chunk],
                          preferred_element_type=jnp.float32)
            hid = jnp.maximum(hid + b1_ref[0:1, lo:lo + ffn_chunk], 0.0)
            ffn = ffn + jnp.dot(hid.astype(cdt), w2_ref[lo:lo + ffn_chunk, :],
                                preferred_element_type=jnp.float32)
        ffn = ffn + b2_ref[...]

        out_ref[0] = (x + ffn).astype(out_ref.dtype)             # dropout2 = id


def transformer_encoder_layer(x, params, nhead, *, tq=None, tkv=None,
                              ffn_chunk=None):
    B, S, D = x.shape
    F = params["w1"].shape[1]
    assert D % nhead == 0
    hd = D // nhead

    tq = min(S, 128) if tq is None else tq
    tkv = min(S, 512) if tkv is None else tkv
    # TODO(synk): pad / mask ragged sequence lengths; currently require divisibility.
    assert S % tq == 0 and S % tkv == 0
    ffn_chunk = min(F, 2048) if ffn_chunk is None else ffn_chunk
    assert F % ffn_chunk == 0
    n_ffn_chunks = F // ffn_chunk

    f32 = jnp.float32
    wdt = jnp.bfloat16
    ln1 = jnp.concatenate([params["ln1_g"], params["ln1_b"]], axis=0).astype(f32)
    ln2 = jnp.concatenate([params["ln2_g"], params["ln2_b"]], axis=0).astype(f32)
    wq = params["wq"].astype(wdt)
    wkv = jnp.concatenate([params["wk"], params["wv"]], axis=1).astype(wdt)
    bqkv = jnp.concatenate([params["bq"], params["bk"], params["bv"]],
                           axis=1).astype(f32)
    wo = params["wo"].astype(wdt)
    bo = params["bo"].astype(f32)
    w1 = params["w1"].astype(wdt)
    b1 = params["b1"].astype(f32)
    w2 = params["w2"].astype(wdt)
    b2 = params["b2"].astype(f32)

    kernel = functools.partial(
        encoder_layer_kernel, nhead=nhead, head_dim=hd, d_model=D,
        ffn_chunk=ffn_chunk, n_ffn_chunks=n_ffn_chunks)

    const = lambda shape: pl.BlockSpec(shape, lambda b, qi, ki: (0,) * len(shape))

    grid = (B, S // tq, S // tkv)

    return pl.pallas_call(
        kernel,
        out_shape=jax.ShapeDtypeStruct((B, S, D), x.dtype),
        grid=grid,
        in_specs=[
            pl.BlockSpec((1, tq, D), lambda b, qi, ki: (b, qi, 0)),   # query rows
            pl.BlockSpec((1, tkv, D), lambda b, qi, ki: (b, ki, 0)),  # key/value rows
            const((2, D)), const((2, D)),                             # ln1, ln2
            const((D, D)),                                            # Wq
            const((D, 2 * D)),                                        # Wk|Wv fused
            const((1, 3 * D)),                                        # bq|bk|bv
            const((D, D)), const((1, D)),                             # Wo, bo
            const((D, F)), const((1, F)),                             # W1, b1
            const((F, D)), const((1, D)),                             # W2, b2
        ],
        out_specs=pl.BlockSpec((1, tq, D), lambda b, qi, ki: (b, qi, 0)),
        scratch_shapes=[
            pltpu.VMEM((nhead, tq, hd), wdt),        # cached scaled Q
            pltpu.VMEM((nhead, tq, 1), jnp.float32),  # m
            pltpu.VMEM((nhead, tq, 1), jnp.float32),  # l
            pltpu.VMEM((nhead, tq, hd), jnp.float32),  # acc
        ],
        compiler_params=pltpu.CompilerParams(
            dimension_semantics=("parallel", "parallel", "arbitrary"),
            vmem_limit_bytes=64 * 1024 * 1024,
        ),
    )(x, x, ln1, ln2, wq, wkv, bqkv, wo, bo, w1, b1, w2, b2)


def reference_forward(x, params, nhead):
    """Pure-JAX f32 reference mirroring the PyTorch forward (eval, pre-norm)."""
    B, S, D = x.shape
    hd = D // nhead
    scale = 1.0 / math.sqrt(hd)

    def ln(v, g, b):
        mu = jnp.mean(v, axis=-1, keepdims=True)
        var = jnp.mean((v - mu) ** 2, axis=-1, keepdims=True)
        return (v - mu) / jnp.sqrt(var + 1e-5) * g + b

    x2 = ln(x, params["ln1_g"], params["ln1_b"])
    q = x2 @ params["wq"] + params["bq"]
    k = x2 @ params["wk"] + params["bk"]
    v = x2 @ params["wv"] + params["bv"]
    q = q.reshape(B, S, nhead, hd).transpose(0, 2, 1, 3)
    k = k.reshape(B, S, nhead, hd).transpose(0, 2, 1, 3)
    v = v.reshape(B, S, nhead, hd).transpose(0, 2, 1, 3)
    s = jnp.einsum("bhqd,bhkd->bhqk", q, k) * scale
    p = jax.nn.softmax(s, axis=-1)
    attn = jnp.einsum("bhqk,bhkd->bhqd", p, v).transpose(0, 2, 1, 3).reshape(B, S, D)
    attn = attn @ params["wo"] + params["bo"]
    x = x + attn
    x2 = ln(x, params["ln2_g"], params["ln2_b"])
    ffn = jnp.maximum(x2 @ params["w1"] + params["b1"], 0.0) @ params["w2"] + params["b2"]
    return x + ffn


if __name__ == "__main__":
    B, S, D, nhead, F = 2, 8, 32, 4, 64

    key = jax.random.PRNGKey(0)
    keys = jax.random.split(key, 12)

    def rnd(k, shape, scale=0.05):
        return jax.random.normal(k, shape, dtype=jnp.float32) * scale

    params = {
        "ln1_g": jnp.ones((1, D), jnp.float32),
        "ln1_b": jnp.zeros((1, D), jnp.float32),
        "wq": rnd(keys[0], (D, D)), "bq": rnd(keys[1], (1, D)),
        "wk": rnd(keys[2], (D, D)), "bk": rnd(keys[3], (1, D)),
        "wv": rnd(keys[4], (D, D)), "bv": rnd(keys[5], (1, D)),
        "wo": rnd(keys[6], (D, D)), "bo": rnd(keys[7], (1, D)),
        "ln2_g": jnp.ones((1, D), jnp.float32),
        "ln2_b": jnp.zeros((1, D), jnp.float32),
        "w1": rnd(keys[8], (D, F)), "b1": rnd(keys[9], (1, F)),
        "w2": rnd(keys[10], (F, D)), "b2": rnd(keys[11], (1, D)),
    }

    x = jax.random.normal(jax.random.PRNGKey(42), (B, S, D), dtype=jnp.float32)

    out = transformer_encoder_layer(x, params, nhead)
    out = jax.block_until_ready(out)

    ref = reference_forward(x, params, nhead)
    assert out.shape == (B, S, D)
    err = jnp.max(jnp.abs(out - ref))
    # bf16 matmuls with f32 accumulation -> tolerance loosened vs. the f32 reference
    assert jnp.allclose(out, ref, atol=2e-2, rtol=2e-2), f"mismatch vs reference (max err {err})"

    # TODO(synk): src_mask / src_key_padding_mask and train-mode dropout are not
    # implemented (forward is run in eval mode with mask=None, as at the call site).
    print("KERNEL_OK")
</pallas_src>

<mosaic_0001>
module attributes {stable_mosaic.version = 11 : i64} {
  func.func @encoder_layer_kernel(%arg0: i32, %arg1: i32, %arg2: i32, %arg3: memref<1x8x32xf32, #tpu.memory_space<vmem>>, %arg4: memref<1x8x32xf32, #tpu.memory_space<vmem>>, %arg5: memref<2x32xf32, #tpu.memory_space<vmem>>, %arg6: memref<2x32xf32, #tpu.memory_space<vmem>>, %arg7: memref<32x32xbf16, #tpu.memory_space<vmem>>, %arg8: memref<32x64xbf16, #tpu.memory_space<vmem>>, %arg9: memref<1x96xf32, #tpu.memory_space<vmem>>, %arg10: memref<32x32xbf16, #tpu.memory_space<vmem>>, %arg11: memref<1x32xf32, #tpu.memory_space<vmem>>, %arg12: memref<32x64xbf16, #tpu.memory_space<vmem>>, %arg13: memref<1x64xf32, #tpu.memory_space<vmem>>, %arg14: memref<64x32xbf16, #tpu.memory_space<vmem>>, %arg15: memref<1x32xf32, #tpu.memory_space<vmem>>, %arg16: memref<1x8x32xf32, #tpu.memory_space<vmem>>, %arg17: memref<4x8x8xbf16, #tpu.memory_space<vmem>>, %arg18: memref<4x8x1xf32, #tpu.memory_space<vmem>>, %arg19: memref<4x8x1xf32, #tpu.memory_space<vmem>>, %arg20: memref<4x8x8xf32, #tpu.memory_space<vmem>>) attributes {dimension_semantics = [#tpu.dimension_semantics<parallel>, #tpu.dimension_semantics<parallel>, #tpu.dimension_semantics<arbitrary>], iteration_bounds = array<i64: 2, 1, 1>, scalar_prefetch = 0 : i64, scratch_operands = 4 : i64, tpu.core_type = #tpu.core_type<tc>, window_params = [{transform_indices = @transform_0, window_bounds = array<i64: 1, 8, 32>}, {transform_indices = @transform_1, window_bounds = array<i64: 1, 8, 32>}, {pipeline_mode = #tpu.pipeline_mode<synchronous>, transform_indices = @transform_2, window_bounds = array<i64: 2, 32>}, {pipeline_mode = #tpu.pipeline_mode<synchronous>, transform_indices = @transform_3, window_bounds = array<i64: 2, 32>}, {pipeline_mode = #tpu.pipeline_mode<synchronous>, transform_indices = @transform_4, window_bounds = array<i64: 32, 32>}, {pipeline_mode = #tpu.pipeline_mode<synchronous>, transform_indices = @transform_5, window_bounds = array<i64: 32, 64>}, {pipeline_mode = #tpu.pipeline_mode<synchronous>, transform_indices = @transform_6, window_bounds = array<i64: 1, 96>}, {pipeline_mode = #tpu.pipeline_mode<synchronous>, transform_indices = @transform_7, window_bounds = array<i64: 32, 32>}, {pipeline_mode = #tpu.pipeline_mode<synchronous>, transform_indices = @transform_8, window_bounds = array<i64: 1, 32>}, {pipeline_mode = #tpu.pipeline_mode<synchronous>, transform_indices = @transform_9, window_bounds = array<i64: 32, 64>}, {pipeline_mode = #tpu.pipeline_mode<synchronous>, transform_indices = @transform_10, window_bounds = array<i64: 1, 64>}, {pipeline_mode = #tpu.pipeline_mode<synchronous>, transform_indices = @transform_11, window_bounds = array<i64: 64, 32>}, {pipeline_mode = #tpu.pipeline_mode<synchronous>, transform_indices = @transform_12, window_bounds = array<i64: 1, 32>}, {transform_indices = @transform_13, window_bounds = array<i64: 1, 8, 32>}]} {
    %c0 = arith.constant 0 : index
    %c0_0 = arith.constant 0 : index
    %0 = vector.load %arg5[%c0, %c0_0] : memref<2x32xf32, #tpu.memory_space<vmem>>, vector<1x32xf32>
    %c1 = arith.constant 1 : index
    %c0_1 = arith.constant 0 : index
    %1 = vector.load %arg5[%c1, %c0_1] : memref<2x32xf32, #tpu.memory_space<vmem>>, vector<1x32xf32>
    %c0_i32 = arith.constant 0 : i32
    %2 = arith.cmpi eq, %arg2, %c0_i32 : i32
    %3 = arith.extui %2 : i1 to i32
    %c0_i32_2 = arith.constant 0 : i32
    %4 = arith.cmpi ne, %3, %c0_i32_2 : i32
    scf.if %4 {
      %c0_44 = arith.constant 0 : index
      %c0_45 = arith.constant 0 : index
      %c0_46 = arith.constant 0 : index
      %72 = vector.load %arg3[%c0_44, %c0_45, %c0_46] : memref<1x8x32xf32, #tpu.memory_space<vmem>>, vector<1x8x32xf32>
      %73 = vector.shape_cast %72 : vector<1x8x32xf32> to vector<8x32xf32>
      %cst_47 = arith.constant dense<0.000000e+00> : vector<8xf32>
      %74 = vector.multi_reduction <add>, %73, %cst_47 [1] : vector<8x32xf32> to vector<8xf32>
      %75 = vector.shape_cast %74 : vector<8xf32> to vector<8x1xf32>
      %cst_48 = arith.constant 3.200000e+01 : f32
      %76 = vector.broadcast %cst_48 : f32 to vector<8x1xf32>
      %77 = arith.divf %75, %76 : vector<8x1xf32>
      %78 = vector.broadcast %77 : vector<8x1xf32> to vector<8x32xf32>
      %79 = arith.subf %73, %78 : vector<8x32xf32>
      %80 = arith.mulf %79, %79 : vector<8x32xf32>
      %cst_49 = arith.constant dense<0.000000e+00> : vector<8xf32>
      %81 = vector.multi_reduction <add>, %80, %cst_49 [1] : vector<8x32xf32> to vector<8xf32>
      %82 = vector.shape_cast %81 : vector<8xf32> to vector<8x1xf32>
      %cst_50 = arith.constant 3.200000e+01 : f32
      %83 = vector.broadcast %cst_50 : f32 to vector<8x1xf32>
      %84 = arith.divf %82, %83 : vector<8x1xf32>
      %85 = vector.broadcast %77 : vector<8x1xf32> to vector<8x32xf32>
      %86 = arith.subf %73, %85 : vector<8x32xf32>
      %cst_51 = arith.constant 9.99999974E-6 : f32
      %87 = vector.broadcast %cst_51 : f32 to vector<8x1xf32>
      %88 = arith.addf %84, %87 : vector<8x1xf32>
      %89 = math.rsqrt %88 : vector<8x1xf32>
      %90 = vector.broadcast %89 : vector<8x1xf32> to vector<8x32xf32>
      %91 = arith.mulf %86, %90 : vector<8x32xf32>
      %92 = vector.broadcast %0 : vector<1x32xf32> to vector<8x32xf32>
      %93 = arith.mulf %91, %92 : vector<8x32xf32>
      %94 = vector.broadcast %1 : vector<1x32xf32> to vector<8x32xf32>
      %95 = arith.addf %93, %94 : vector<8x32xf32>
      %96 = arith.truncf %95 : vector<8x32xf32> to vector<8x32xbf16>
      %c0_52 = arith.constant 0 : index
      %c0_53 = arith.constant 0 : index
      %97 = vector.load %arg7[%c0_52, %c0_53] : memref<32x32xbf16, #tpu.memory_space<vmem>>, vector<32x32xbf16>
      %cst_54 = arith.constant dense<0.000000e+00> : vector<8x32xf32>
      %98 = tpu.matmul %96, %97, %cst_54 {dimension_numbers = #tpu.dot_dimension_numbers<[1], [0], [0], [1], [0, 0, 1, 1], [], []>} : vector<8x32xbf16>, vector<32x32xbf16>, vector<8x32xf32> -> vector<8x32xf32>
      %c0_55 = arith.constant 0 : index
      %c0_56 = arith.constant 0 : index
      %99 = vector.load %arg9[%c0_55, %c0_56] : memref<1x96xf32, #tpu.memory_space<vmem>>, vector<1x32xf32>
      %100 = vector.broadcast %99 : vector<1x32xf32> to vector<8x32xf32>
      %101 = arith.addf %98, %100 : vector<8x32xf32>
      %cst_57 = arith.constant 0.353553385 : f32
      %102 = vector.broadcast %cst_57 : f32 to vector<8x32xf32>
      %103 = arith.mulf %101, %102 : vector<8x32xf32>
      %104 = vector.shape_cast %103 : vector<8x32xf32> to vector<8x4x8xf32>
      %105 = tpu.transpose %104, [1, 0, 2] : vector<8x4x8xf32> -> vector<4x8x8xf32>
      %106 = arith.truncf %105 : vector<4x8x8xf32> to vector<4x8x8xbf16>
      %c0_58 = arith.constant 0 : index
      %c0_59 = arith.constant 0 : index
      %c0_60 = arith.constant 0 : index
      %107 = vector.load %arg17[%c0_58, %c0_59, %c0_60] : memref<4x8x8xbf16, #tpu.memory_space<vmem>>, vector<4x8x8xbf16>
      tpu.vector_store %arg17[%c0_58, %c0_59, %c0_60], %106 {strides = array<i32>} : memref<4x8x8xbf16, #tpu.memory_space<vmem>>, vector<4x8x8xbf16>,
      %cst_61 = arith.constant 0xFF800000 : f32
      %108 = vector.broadcast %cst_61 : f32 to vector<4x8x1xf32>
      %c0_62 = arith.constant 0 : index
      %c0_63 = arith.constant 0 : index
      %c0_64 = arith.constant 0 : index
      %109 = vector.load %arg18[%c0_62, %c0_63, %c0_64] : memref<4x8x1xf32, #tpu.memory_space<vmem>>, vector<4x8x1xf32>
      tpu.vector_store %arg18[%c0_62, %c0_63, %c0_64], %108 {strides = array<i32>} : memref<4x8x1xf32, #tpu.memory_space<vmem>>, vector<4x8x1xf32>,
      %cst_65 = arith.constant 0.000000e+00 : f32
      %110 = vector.broadcast %cst_65 : f32 to vector<4x8x1xf32>
      %c0_66 = arith.constant 0 : index
      %c0_67 = arith.constant 0 : index
      %c0_68 = arith.constant 0 : index
      %111 = vector.load %arg19[%c0_66, %c0_67, %c0_68] : memref<4x8x1xf32, #tpu.memory_space<vmem>>, vector<4x8x1xf32>
      tpu.vector_store %arg19[%c0_66, %c0_67, %c0_68], %110 {strides = array<i32>} : memref<4x8x1xf32, #tpu.memory_space<vmem>>, vector<4x8x1xf32>,
      %cst_69 = arith.constant 0.000000e+00 : f32
      %112 = vector.broadcast %cst_69 : f32 to vector<4x8x8xf32>
      %c0_70 = arith.constant 0 : index
      %c0_71 = arith.constant 0 : index
      %c0_72 = arith.constant 0 : index
      %113 = vector.load %arg20[%c0_70, %c0_71, %c0_72] : memref<4x8x8xf32, #tpu.memory_space<vmem>>, vector<4x8x8xf32>
      tpu.vector_store %arg20[%c0_70, %c0_71, %c0_72], %112 {strides = array<i32>} : memref<4x8x8xf32, #tpu.memory_space<vmem>>, vector<4x8x8xf32>,
    } else {
    }
    %c0_3 = arith.constant 0 : index
    %c0_4 = arith.constant 0 : index
    %c0_5 = arith.constant 0 : index
    %5 = vector.load %arg4[%c0_3, %c0_4, %c0_5] : memref<1x8x32xf32, #tpu.memory_space<vmem>>, vector<1x8x32xf32>
    %6 = vector.shape_cast %5 : vector<1x8x32xf32> to vector<8x32xf32>
    %cst = arith.constant dense<0.000000e+00> : vector<8xf32>
    %7 = vector.multi_reduction <add>, %6, %cst [1] : vector<8x32xf32> to vector<8xf32>
    %8 = vector.shape_cast %7 : vector<8xf32> to vector<8x1xf32>
    %cst_6 = arith.constant 3.200000e+01 : f32
    %9 = vector.broadcast %cst_6 : f32 to vector<8x1xf32>
    %10 = arith.divf %8, %9 : vector<8x1xf32>
    %11 = vector.broadcast %10 : vector<8x1xf32> to vector<8x32xf32>
    %12 = arith.subf %6, %11 : vector<8x32xf32>
    %13 = arith.mulf %12, %12 : vector<8x32xf32>
    %cst_7 = arith.constant dense<0.000000e+00> : vector<8xf32>
    %14 = vector.multi_reduction <add>, %13, %cst_7 [1] : vector<8x32xf32> to vector<8xf32>
    %15 = vector.shape_cast %14 : vector<8xf32> to vector<8x1xf32>
    %cst_8 = arith.constant 3.200000e+01 : f32
    %16 = vector.broadcast %cst_8 : f32 to vector<8x1xf32>
    %17 = arith.divf %15, %16 : vector<8x1xf32>
    %18 = vector.broadcast %10 : vector<8x1xf32> to vector<8x32xf32>
    %19 = arith.subf %6, %18 : vector<8x32xf32>
    %cst_9 = arith.constant 9.99999974E-6 : f32
    %20 = vector.broadcast %cst_9 : f32 to vector<8x1xf32>
    %21 = arith.addf %17, %20 : vector<8x1xf32>
    %22 = math.rsqrt %21 : vector<8x1xf32>
    %23 = vector.broadcast %22 : vector<8x1xf32> to vector<8x32xf32>
    %24 = arith.mulf %19, %23 : vector<8x32xf32>
    %25 = vector.broadcast %0 : vector<1x32xf32> to vector<8x32xf32>
    %26 = arith.mulf %24, %25 : vector<8x32xf32>
    %27 = vector.broadcast %1 : vector<1x32xf32> to vector<8x32xf32>
    %28 = arith.addf %26, %27 : vector<8x32xf32>
    %29 = arith.truncf %28 : vector<8x32xf32> to vector<8x32xbf16>
    %c0_10 = arith.constant 0 : index
    %c0_11 = arith.constant 0 : index
    %30 = vector.load %arg8[%c0_10, %c0_11] : memref<32x64xbf16, #tpu.memory_space<vmem>>, vector<32x64xbf16>
    %cst_12 = arith.constant dense<0.000000e+00> : vector<8x64xf32>
    %31 = tpu.matmul %29, %30, %cst_12 {dimension_numbers = #tpu.dot_dimension_numbers<[1], [0], [0], [1], [0, 0, 1, 1], [], []>} : vector<8x32xbf16>, vector<32x64xbf16>, vector<8x64xf32> -> vector<8x64xf32>
    %c0_13 = arith.constant 0 : index
    %c32 = arith.constant 32 : index
    %32 = vector.load %arg9[%c0_13, %c32] : memref<1x96xf32, #tpu.memory_space<vmem>>, vector<1x64xf32>
    %33 = vector.broadcast %32 : vector<1x64xf32> to vector<8x64xf32>
    %34 = arith.addf %31, %33 : vector<8x64xf32>
    %35 = vector.extract_strided_slice %34 {offsets = [0, 0], sizes = [8, 32], strides = [1, 1]} : vector<8x64xf32> to vector<8x32xf32>
    %36 = vector.shape_cast %35 : vector<8x32xf32> to vector<8x4x8xf32>
    %37 = tpu.transpose %36, [1, 0, 2] : vector<8x4x8xf32> -> vector<4x8x8xf32>
    %38 = arith.truncf %37 : vector<4x8x8xf32> to vector<4x8x8xbf16>
    %39 = vector.extract_strided_slice %34 {offsets = [0, 32], sizes = [8, 32], strides = [1, 1]} : vector<8x64xf32> to vector<8x32xf32>
    %40 = vector.shape_cast %39 : vector<8x32xf32> to vector<8x4x8xf32>
    %41 = tpu.transpose %40, [1, 0, 2] : vector<8x4x8xf32> -> vector<4x8x8xf32>
    %42 = arith.truncf %41 : vector<4x8x8xf32> to vector<4x8x8xbf16>
    %c0_14 = arith.constant 0 : index
    %c0_15 = arith.constant 0 : index
    %c0_16 = arith.constant 0 : index
    %43 = vector.load %arg17[%c0_14, %c0_15, %c0_16] : memref<4x8x8xbf16, #tpu.memory_space<vmem>>, vector<4x8x8xbf16>
    "tpu.trace_start"() <{level = 10 : i32, message = "hqd,hkd->hqk"}> : () -> ()
    %cst_17 = arith.constant dense<0.000000e+00> : vector<4x8x8xf32>
    %44 = tpu.matmul %43, %38, %cst_17 {dimension_numbers = #tpu.dot_dimension_numbers<[2], [2], [1], [1], [0, 0, 0, 1, 1, 1], [0], [0]>} : vector<4x8x8xbf16>, vector<4x8x8xbf16>, vector<4x8x8xf32> -> vector<4x8x8xf32>
    "tpu.trace_stop"() : () -> ()
    %c0_18 = arith.constant 0 : index
    %c0_19 = arith.constant 0 : index
    %c0_20 = arith.constant 0 : index
    %45 = vector.load %arg18[%c0_18, %c0_19, %c0_20] : memref<4x8x1xf32, #tpu.memory_space<vmem>>, vector<4x8x1xf32>
    %cst_21 = arith.constant dense<0xFF800000> : vector<4x8xf32>
    %46 = vector.multi_reduction <maximumf>, %44, %cst_21 [2] : vector<4x8x8xf32> to vector<4x8xf32>
    %47 = vector.shape_cast %46 : vector<4x8xf32> to vector<4x8x1xf32>
    %48 = arith.maximumf %45, %47 : vector<4x8x1xf32>
    %c0_22 = arith.constant 0 : index
    %c0_23 = arith.constant 0 : index
    %c0_24 = arith.constant 0 : index
    %49 = vector.load %arg18[%c0_22, %c0_23, %c0_24] : memref<4x8x1xf32, #tpu.memory_space<vmem>>, vector<4x8x1xf32>
    %50 = arith.subf %49, %48 : vector<4x8x1xf32>
    %51 = math.exp %50 : vector<4x8x1xf32>
    %52 = vector.broadcast %48 : vector<4x8x1xf32> to vector<4x8x8xf32>
    %53 = arith.subf %44, %52 : vector<4x8x8xf32>
    %54 = math.exp %53 : vector<4x8x8xf32>
    %c0_25 = arith.constant 0 : index
    %c0_26 = arith.constant 0 : index
    %c0_27 = arith.constant 0 : index
    %55 = vector.load %arg19[%c0_25, %c0_26, %c0_27] : memref<4x8x1xf32, #tpu.memory_space<vmem>>, vector<4x8x1xf32>
    %56 = arith.mulf %51, %55 : vector<4x8x1xf32>
    %cst_28 = arith.constant dense<0.000000e+00> : vector<4x8xf32>
    %57 = vector.multi_reduction <add>, %54, %cst_28 [2] : vector<4x8x8xf32> to vector<4x8xf32>
    %58 = vector.shape_cast %57 : vector<4x8xf32> to vector<4x8x1xf32>
    %59 = arith.addf %56, %58 : vector<4x8x1xf32>
    %c0_29 = arith.constant 0 : index
    %c0_30 = arith.constant 0 : index
    %c0_31 = arith.constant 0 : index
    %60 = vector.load %arg19[%c0_29, %c0_30, %c0_31] : memref<4x8x1xf32, #tpu.memory_space<vmem>>, vector<4x8x1xf32>
    tpu.vector_store %arg19[%c0_29, %c0_30, %c0_31], %59 {strides = array<i32>} : memref<4x8x1xf32, #tpu.memory_space<vmem>>, vector<4x8x1xf32>,
    %c0_32 = arith.constant 0 : index
    %c0_33 = arith.constant 0 : index
    %c0_34 = arith.constant 0 : index
    %61 = vector.load %arg20[%c0_32, %c0_33, %c0_34] : memref<4x8x8xf32, #tpu.memory_space<vmem>>, vector<4x8x8xf32>
    %62 = vector.broadcast %51 : vector<4x8x1xf32> to vector<4x8x8xf32>
    %63 = arith.mulf %62, %61 : vector<4x8x8xf32>
    %64 = arith.truncf %54 : vector<4x8x8xf32> to vector<4x8x8xbf16>
    "tpu.trace_start"() <{level = 10 : i32, message = "hqk,hkd->hqd"}> : () -> ()
    %cst_35 = arith.constant dense<0.000000e+00> : vector<4x8x8xf32>
    %65 = tpu.matmul %64, %42, %cst_35 {dimension_numbers = #tpu.dot_dimension_numbers<[2], [1], [1], [2], [0, 0, 0, 1, 1, 2], [0], [0]>} : vector<4x8x8xbf16>, vector<4x8x8xbf16>, vector<4x8x8xf32> -> vector<4x8x8xf32>
    "tpu.trace_stop"() : () -> ()
    %66 = arith.addf %63, %65 : vector<4x8x8xf32>
    %c0_36 = arith.constant 0 : index
    %c0_37 = arith.constant 0 : index
    %c0_38 = arith.constant 0 : index
    %67 = vector.load %arg20[%c0_36, %c0_37, %c0_38] : memref<4x8x8xf32, #tpu.memory_space<vmem>>, vector<4x8x8xf32>
    tpu.vector_store %arg20[%c0_36, %c0_37, %c0_38], %66 {strides = array<i32>} : memref<4x8x8xf32, #tpu.memory_space<vmem>>, vector<4x8x8xf32>,
    %c0_39 = arith.constant 0 : index
    %c0_40 = arith.constant 0 : index
    %c0_41 = arith.constant 0 : index
    %68 = vector.load %arg18[%c0_39, %c0_40, %c0_41] : memref<4x8x1xf32, #tpu.memory_space<vmem>>, vector<4x8x1xf32>
    tpu.vector_store %arg18[%c0_39, %c0_40, %c0_41], %48 {strides = array<i32>} : memref<4x8x1xf32, #tpu.memory_space<vmem>>, vector<4x8x1xf32>,
    %c0_i32_42 = arith.constant 0 : i32
    %69 = arith.cmpi eq, %arg2, %c0_i32_42 : i32
    %70 = arith.extui %69 : i1 to i32
    %c0_i32_43 = arith.constant 0 : i32
    %71 = arith.cmpi ne, %70, %c0_i32_43 : i32
    scf.if %71 {
      %c0_44 = arith.constant 0 : index
      %c0_45 = arith.constant 0 : index
      %c0_46 = arith.constant 0 : index
      %72 = vector.load %arg20[%c0_44, %c0_45, %c0_46] : memref<4x8x8xf32, #tpu.memory_space<vmem>>, vector<4x8x8xf32>
      %c0_47 = arith.constant 0 : index
      %c0_48 = arith.constant 0 : index
      %c0_49 = arith.constant 0 : index
      %73 = vector.load %arg19[%c0_47, %c0_48, %c0_49] : memref<4x8x1xf32, #tpu.memory_space<vmem>>, vector<4x8x1xf32>
      %74 = tpu.reciprocal %73 {approx = true} : vector<4x8x1xf32> -> vector<4x8x1xf32>
      %75 = vector.broadcast %74 : vector<4x8x1xf32> to vector<4x8x8xf32>
      %76 = arith.mulf %72, %75 : vector<4x8x8xf32>
      %77 = tpu.transpose %76, [1, 0, 2] : vector<4x8x8xf32> -> vector<8x4x8xf32>
      %78 = vector.shape_cast %77 : vector<8x4x8xf32> to vector<8x32xf32>
      %79 = arith.truncf %78 : vector<8x32xf32> to vector<8x32xbf16>
      %c0_50 = arith.constant 0 : index
      %c0_51 = arith.constant 0 : index
      %80 = vector.load %arg10[%c0_50, %c0_51] : memref<32x32xbf16, #tpu.memory_space<vmem>>, vector<32x32xbf16>
      %cst_52 = arith.constant dense<0.000000e+00> : vector<8x32xf32>
      %81 = tpu.matmul %79, %80, %cst_52 {dimension_numbers = #tpu.dot_dimension_numbers<[1], [0], [0], [1], [0, 0, 1, 1], [], []>} : vector<8x32xbf16>, vector<32x32xbf16>, vector<8x32xf32> -> vector<8x32xf32>
      %c0_53 = arith.constant 0 : index
      %c0_54 = arith.constant 0 : index
      %82 = vector.load %arg11[%c0_53, %c0_54] : memref<1x32xf32, #tpu.memory_space<vmem>>, vector<1x32xf32>
      %83 = vector.broadcast %82 : vector<1x32xf32> to vector<8x32xf32>
      %84 = arith.addf %81, %83 : vector<8x32xf32>
      %c0_55 = arith.constant 0 : index
      %c0_56 = arith.constant 0 : index
      %c0_57 = arith.constant 0 : index
      %85 = vector.load %arg3[%c0_55, %c0_56, %c0_57] : memref<1x8x32xf32, #tpu.memory_space<vmem>>, vector<1x8x32xf32>
      %86 = vector.shape_cast %85 : vector<1x8x32xf32> to vector<8x32xf32>
      %87 = arith.addf %86, %84 : vector<8x32xf32>
      %c0_58 = arith.constant 0 : index
      %c0_59 = arith.constant 0 : index
      %88 = vector.load %arg6[%c0_58, %c0_59] : memref<2x32xf32, #tpu.memory_space<vmem>>, vector<1x32xf32>
      %c1_60 = arith.constant 1 : index
      %c0_61 = arith.constant 0 : index
      %89 = vector.load %arg6[%c1_60, %c0_61] : memref<2x32xf32, #tpu.memory_space<vmem>>, vector<1x32xf32>
      %cst_62 = arith.constant dense<0.000000e+00> : vector<8xf32>
      %90 = vector.multi_reduction <add>, %87, %cst_62 [1] : vector<8x32xf32> to vector<8xf32>
      %91 = vector.shape_cast %90 : vector<8xf32> to vector<8x1xf32>
      %cst_63 = arith.constant 3.200000e+01 : f32
      %92 = vector.broadcast %cst_63 : f32 to vector<8x1xf32>
      %93 = arith.divf %91, %92 : vector<8x1xf32>
      %94 = vector.broadcast %93 : vector<8x1xf32> to vector<8x32xf32>
      %95 = arith.subf %87, %94 : vector<8x32xf32>
      %96 = arith.mulf %95, %95 : vector<8x32xf32>
      %cst_64 = arith.constant dense<0.000000e+00> : vector<8xf32>
      %97 = vector.multi_reduction <add>, %96, %cst_64 [1] : vector<8x32xf32> to vector<8xf32>
      %98 = vector.shape_cast %97 : vector<8xf32> to vector<8x1xf32>
      %cst_65 = arith.constant 3.200000e+01 : f32
      %99 = vector.broadcast %cst_65 : f32 to vector<8x1xf32>
      %100 = arith.divf %98, %99 : vector<8x1xf32>
      %101 = vector.broadcast %93 : vector<8x1xf32> to vector<8x32xf32>
      %102 = arith.subf %87, %101 : vector<8x32xf32>
      %cst_66 = arith.constant 9.99999974E-6 : f32
      %103 = vector.broadcast %cst_66 : f32 to vector<8x1xf32>
      %104 = arith.addf %100, %103 : vector<8x1xf32>
      %105 = math.rsqrt %104 : vector<8x1xf32>
      %106 = vector.broadcast %105 : vector<8x1xf32> to vector<8x32xf32>
      %107 = arith.mulf %102, %106 : vector<8x32xf32>
      %108 = vector.broadcast %88 : vector<1x32xf32> to vector<8x32xf32>
      %109 = arith.mulf %107, %108 : vector<8x32xf32>
      %110 = vector.broadcast %89 : vector<1x32xf32> to vector<8x32xf32>
      %111 = arith.addf %109, %110 : vector<8x32xf32>
      %112 = arith.truncf %111 : vector<8x32xf32> to vector<8x32xbf16>
      %cst_67 = arith.constant 0.000000e+00 : f32
      %113 = vector.broadcast %cst_67 : f32 to vector<8x32xf32>
      %c0_68 = arith.constant 0 : index
      %c0_69 = arith.constant 0 : index
      %114 = vector.load %arg12[%c0_68, %c0_69] : memref<32x64xbf16, #tpu.memory_space<vmem>>, vector<32x64xbf16>
      %cst_70 = arith.constant dense<0.000000e+00> : vector<8x64xf32>
      %115 = tpu.matmul %112, %114, %cst_70 {dimension_numbers = #tpu.dot_dimension_numbers<[1], [0], [0], [1], [0, 0, 1, 1], [], []>} : vector<8x32xbf16>, vector<32x64xbf16>, vector<8x64xf32> -> vector<8x64xf32>
      %c0_71 = arith.constant 0 : index
      %c0_72 = arith.constant 0 : index
      %116 = vector.load %arg13[%c0_71, %c0_72] : memref<1x64xf32, #tpu.memory_space<vmem>>, vector<1x64xf32>
      %117 = vector.broadcast %116 : vector<1x64xf32> to vector<8x64xf32>
      %118 = arith.addf %115, %117 : vector<8x64xf32>
      %cst_73 = arith.constant 0.000000e+00 : f32
      %119 = vector.broadcast %cst_73 : f32 to vector<8x64xf32>
      %120 = arith.maximumf %118, %119 : vector<8x64xf32>
      %121 = arith.truncf %120 : vector<8x64xf32> to vector<8x64xbf16>
      %c0_74 = arith.constant 0 : index
      %c0_75 = arith.constant 0 : index
      %122 = vector.load %arg14[%c0_74, %c0_75] : memref<64x32xbf16, #tpu.memory_space<vmem>>, vector<64x32xbf16>
      %cst_76 = arith.constant dense<0.000000e+00> : vector<8x32xf32>
      %123 = tpu.matmul %121, %122, %cst_76 {dimension_numbers = #tpu.dot_dimension_numbers<[1], [0], [0], [1], [0, 0, 1, 1], [], []>} : vector<8x64xbf16>, vector<64x32xbf16>, vector<8x32xf32> -> vector<8x32xf32>
      %124 = arith.addf %113, %123 : vector<8x32xf32>
      %c0_77 = arith.constant 0 : index
      %c0_78 = arith.constant 0 : index
      %125 = vector.load %arg15[%c0_77, %c0_78] : memref<1x32xf32, #tpu.memory_space<vmem>>, vector<1x32xf32>
      %126 = vector.broadcast %125 : vector<1x32xf32> to vector<8x32xf32>
      %127 = arith.addf %124, %126 : vector<8x32xf32>
      %128 = arith.addf %87, %127 : vector<8x32xf32>
      %c0_79 = arith.constant 0 : index
      %c0_80 = arith.constant 0 : index
      %c0_81 = arith.constant 0 : index
      %129 = vector.load %arg16[%c0_79, %c0_80, %c0_81] : memref<1x8x32xf32, #tpu.memory_space<vmem>>, vector<1x8x32xf32>
      %130 = vector.shape_cast %129 : vector<1x8x32xf32> to vector<8x32xf32>
      %131 = vector.shape_cast %128 : vector<8x32xf32> to vector<1x8x32xf32>
      tpu.vector_store %arg16[%c0_79, %c0_80, %c0_81], %131 {strides = array<i32>} : memref<1x8x32xf32, #tpu.memory_space<vmem>>, vector<1x8x32xf32>,
    } else {
    }
    return
  }
  func.func @transform_0(%arg0: i32, %arg1: i32, %arg2: i32) -> (i32, i32, i32) {
    %c0_i32 = arith.constant 0 : i32
    %c0_i32_0 = arith.constant 0 : i32
    return %arg0, %arg1, %c0_i32 : i32, i32, i32
  }
  func.func @transform_1(%arg0: i32, %arg1: i32, %arg2: i32) -> (i32, i32, i32) {
    %c0_i32 = arith.constant 0 : i32
    %c0_i32_0 = arith.constant 0 : i32
    return %arg0, %arg2, %c0_i32 : i32, i32, i32
  }
  func.func @transform_2(%arg0: i32, %arg1: i32, %arg2: i32) -> (i32, i32) {
    %c0_i32 = arith.constant 0 : i32
    %c0_i32_0 = arith.constant 0 : i32
    %c0_i32_1 = arith.constant 0 : i32
    return %c0_i32, %c0_i32_0 : i32, i32
  }
  func.func @transform_3(%arg0: i32, %arg1: i32, %arg2: i32) -> (i32, i32) {
    %c0_i32 = arith.constant 0 : i32
    %c0_i32_0 = arith.constant 0 : i32
    %c0_i32_1 = arith.constant 0 : i32
    return %c0_i32, %c0_i32_0 : i32, i32
  }
  func.func @transform_4(%arg0: i32, %arg1: i32, %arg2: i32) -> (i32, i32) {
    %c0_i32 = arith.constant 0 : i32
    %c0_i32_0 = arith.constant 0 : i32
    %c0_i32_1 = arith.constant 0 : i32
    return %c0_i32, %c0_i32_0 : i32, i32
  }
  func.func @transform_5(%arg0: i32, %arg1: i32, %arg2: i32) -> (i32, i32) {
    %c0_i32 = arith.constant 0 : i32
    %c0_i32_0 = arith.constant 0 : i32
    %c0_i32_1 = arith.constant 0 : i32
    return %c0_i32, %c0_i32_0 : i32, i32
  }
  func.func @transform_6(%arg0: i32, %arg1: i32, %arg2: i32) -> (i32, i32) {
    %c0_i32 = arith.constant 0 : i32
    %c0_i32_0 = arith.constant 0 : i32
    %c0_i32_1 = arith.constant 0 : i32
    return %c0_i32, %c0_i32_0 : i32, i32
  }
  func.func @transform_7(%arg0: i32, %arg1: i32, %arg2: i32) -> (i32, i32) {
    %c0_i32 = arith.constant 0 : i32
    %c0_i32_0 = arith.constant 0 : i32
    %c0_i32_1 = arith.constant 0 : i32
    return %c0_i32, %c0_i32_0 : i32, i32
  }
  func.func @transform_8(%arg0: i32, %arg1: i32, %arg2: i32) -> (i32, i32) {
    %c0_i32 = arith.constant 0 : i32
    %c0_i32_0 = arith.constant 0 : i32
    %c0_i32_1 = arith.constant 0 : i32
    return %c0_i32, %c0_i32_0 : i32, i32
  }
  func.func @transform_9(%arg0: i32, %arg1: i32, %arg2: i32) -> (i32, i32) {
    %c0_i32 = arith.constant 0 : i32
    %c0_i32_0 = arith.constant 0 : i32
    %c0_i32_1 = arith.constant 0 : i32
    return %c0_i32, %c0_i32_0 : i32, i32
  }
  func.func @transform_10(%arg0: i32, %arg1: i32, %arg2: i32) -> (i32, i32) {
    %c0_i32 = arith.constant 0 : i32
    %c0_i32_0 = arith.constant 0 : i32
    %c0_i32_1 = arith.constant 0 : i32
    return %c0_i32, %c0_i32_0 : i32, i32
  }
  func.func @transform_11(%arg0: i32, %arg1: i32, %arg2: i32) -> (i32, i32) {
    %c0_i32 = arith.constant 0 : i32
    %c0_i32_0 = arith.constant 0 : i32
    %c0_i32_1 = arith.constant 0 : i32
    return %c0_i32, %c0_i32_0 : i32, i32
  }
  func.func @transform_12(%arg0: i32, %arg1: i32, %arg2: i32) -> (i32, i32) {
    %c0_i32 = arith.constant 0 : i32
    %c0_i32_0 = arith.constant 0 : i32
    %c0_i32_1 = arith.constant 0 : i32
    return %c0_i32, %c0_i32_0 : i32, i32
  }
  func.func @transform_13(%arg0: i32, %arg1: i32, %arg2: i32) -> (i32, i32, i32) {
    %c0_i32 = arith.constant 0 : i32
    %c0_i32_0 = arith.constant 0 : i32
    return %arg0, %arg1, %c0_i32 : i32, i32, i32
  }
}

</mosaic_0001>

<llo_original>
// kernel: tpu_custom_call.1
$region0: #{tpu_custom_call.1}
  #allocation0 [shape = 'u32[]', space=smem, size = 0x4, offset = 0x4, fixed_abs, tag = 'smem constant byte address 0x4 - core index']
  #allocation1 [shape = 'u32[144,128]{1,0:T(1,128)}', space=vmem, size = 0x12000, scoped, tag = 'internal scratch']
  #allocation2 [shape = 'bf16[4,8,8]{2,1,0:T(8,128)(2,1)}', space=vmem, size = 0x2000, scoped, tag = 'scratch operand']
  #allocation3 [shape = 'f32[4,8,1]{2,1,0:T(8,128)}', space=vmem, size = 0x4000, scoped, tag = 'scratch operand']
  #allocation4 [shape = 'f32[4,8,1]{2,1,0:T(8,128)}', space=vmem, size = 0x4000, scoped, tag = 'scratch operand']
  #allocation5 [shape = 'f32[4,8,8]{2,1,0:T(8,128)}', space=vmem, size = 0x4000, scoped, tag = 'scratch operand']
  %s0 = inlined_call_operand.hbm [shape: f32[2,8,32], index: 0, kind: input, shape index: {}]
  %s1 = inlined_call_operand.hbm [shape: f32[2,8,32], index: 1, kind: input, shape index: {}]
  %s2 = inlined_call_operand.hbm [shape: f32[2,32], index: 2, kind: input, shape index: {}]
  %s3 = inlined_call_operand.hbm [shape: f32[2,32], index: 3, kind: input, shape index: {}]
  %s4 = inlined_call_operand.hbm [shape: bf16[32,32], index: 4, kind: input, shape index: {}]
  %s5 = inlined_call_operand.hbm [shape: bf16[32,64], index: 5, kind: input, shape index: {}]
  %s6 = inlined_call_operand.hbm [shape: f32[1,96], index: 6, kind: input, shape index: {}]
  %s7 = inlined_call_operand.hbm [shape: bf16[32,32], index: 7, kind: input, shape index: {}]
  %s8 = inlined_call_operand.hbm [shape: f32[1,32], index: 8, kind: input, shape index: {}]
  %s9 = inlined_call_operand.hbm [shape: bf16[32,64], index: 9, kind: input, shape index: {}]
  %s10 = inlined_call_operand.hbm [shape: f32[1,64], index: 10, kind: input, shape index: {}]
  %s11 = inlined_call_operand.hbm [shape: bf16[64,32], index: 11, kind: input, shape index: {}]
  %s12 = inlined_call_operand.hbm [shape: f32[1,32], index: 12, kind: input, shape index: {}]
  %s13 = inlined_call_operand.hbm [shape: f32[2,8,32], index: 13, kind: output, shape index: {}]
  %s14 = sld [smem:[#allocation0]]
  $region145: #{tpu_custom_call.1} parent=0
    _
  %s16 = ssub.s32 1, %s14
  %s17 = scalar_select 0, %s16, %s14
  $region1: #{tpu_custom_call.1} parent=0
    #allocation6 [shape = 'u8[8192]{0}', space=vmem, size = 0x2000, scoped, tag = 'input window, operand 0']
    #allocation7 [shape = 's32[2]{0}', space=sflag, size = 0x8, scoped, tag = 'scoped memory for tpu_custom_call.1']
    #allocation8 [shape = 's32[2]{0}', space=sflag, size = 0x8, scoped, tag = 'scoped memory for tpu_custom_call.1']
    #allocation9 [shape = 'u8[8192]{0}', space=vmem, size = 0x2000, scoped, tag = 'input window, operand 1']
    #allocation10 [shape = 's32[2]{0}', space=sflag, size = 0x8, scoped, tag = 'scoped memory for tpu_custom_call.1']
    #allocation11 [shape = 'u8[1024]{0}', space=vmem, size = 0x400, scoped, tag = 'input window, operand 2, single buffered']
    #allocation12 [shape = 'u8[1024]{0}', space=vmem, size = 0x400, scoped, tag = 'input window, operand 3, single buffered']
    #allocation13 [shape = 's32[1]{0}', space=sflag, size = 0x4, scoped, tag = 'scoped memory for tpu_custom_call.1']
    #allocation14 [shape = 'u8[8192]{0}', space=vmem, size = 0x2000, scoped, tag = 'input window, operand 4, single buffered']
    #allocation15 [shape = 'u8[8192]{0}', space=vmem, size = 0x2000, scoped, tag = 'input window, operand 5, single buffered']
    #allocation16 [shape = 's32[1]{0}', space=sflag, size = 0x4, scoped, tag = 'scoped memory for tpu_custom_call.1']
    #allocation17 [shape = 'u8[512]{0}', space=vmem, size = 0x400, scoped, tag = 'input window, operand 6, single buffered']
    #allocation18 [shape = 'u8[8192]{0}', space=vmem, size = 0x2000, scoped, tag = 'input window, operand 7, single buffered']
    #allocation19 [shape = 's32[1]{0}', space=sflag, size = 0x4, scoped, tag = 'scoped memory for tpu_custom_call.1']
    #allocation20 [shape = 'u8[512]{0}', space=vmem, size = 0x400, scoped, tag = 'input window, operand 8, single buffered']
    #allocation21 [shape = 'u8[8192]{0}', space=vmem, size = 0x2000, scoped, tag = 'input window, operand 9, single buffered']
    #allocation22 [shape = 's32[1]{0}', space=sflag, size = 0x4, scoped, tag = 'scoped memory for tpu_custom_call.1']
    #allocation23 [shape = 'u8[512]{0}', space=vmem, size = 0x400, scoped, tag = 'input window, operand 10, single buffered']
    #allocation24 [shape = 'u8[16384]{0}', space=vmem, size = 0x4000, scoped, tag = 'input window, operand 11, single buffered']
    #allocation25 [shape = 's32[1]{0}', space=sflag, size = 0x4, scoped, tag = 'scoped memory for tpu_custom_call.1']
    #allocation26 [shape = 'u8[512]{0}', space=vmem, size = 0x400, scoped, tag = 'input window, operand 12, single buffered']
    #allocation27 [shape = 'u8[8192]{0}', space=vmem, size = 0x2000, scoped, tag = 'output window, operand 0']
    %18 = vsyncpa [#allocation7], 0
    %s19 = scalar_lea.sflag [#allocation7], 1
    %20 = vsyncpa %s19, 0
    %21 = vsyncpa [#allocation10], 0
    %s22 = scalar_lea.sflag [#allocation10], 1
    %23 = vsyncpa %s22, 0
    %24 = vsyncpa [#allocation13], 0
    %25 = vsyncpa [#allocation16], 0
    %26 = vsyncpa [#allocation19], 0
    %27 = vsyncpa [#allocation22], 0
    %28 = vsyncpa [#allocation25], 0
    %29 = vsyncpa [#allocation8], 0
    %s30 = scalar_lea.sflag [#allocation8], 1
    %31 = vsyncpa %s30, 0
    loop: start=0, step=1, limit=4
    $region2: #{tpu_custom_call.1} parent=1 // loop_pre_header
      _
    $region3: #{tpu_custom_call.1} parent=1 // loop_header
      %s33 = sphi 0, %s37
      %p34 = scmp.ge.s32.totalorder %s33, 4
      %s40 = sphi 0, %s59
      %s41 = sphi 0, %s55
      %s42 = sphi 0, %s51
      %s43 = sphi 0, %s40
      %s44 = sphi 0, %s41
      %s45 = sphi 0, %s42
      %s46 = sphi 0, %s43
      %s47 = sphi 0, %s44
      %s48 = sphi 0, %s45
      %s64 = sphi 0, %s66
      %s67 = sphi 0, %s64
      %s68 = sphi 0, %s67
      %s84 = sphi 0, %s68
      %s92 = sphi 0, %s94
      %s95 = sphi 0, %s92
      %s96 = sphi 0, %s95
      %s112 = sphi 0, %s96
      %s116 = sphi 0, %s116
      %s118 = sphi 0, %s116
      %s119 = sphi 0, %s118
      %s133 = sphi 0, %s119
      %s137 = sphi 0, %s137
      %s139 = sphi 0, %s137
      %s140 = sphi 0, %s139
      %s154 = sphi 0, %s140
      %s158 = sphi 0, %s158
      %s160 = sphi 0, %s158
      %s161 = sphi 0, %s160
      %s175 = sphi 0, %s161
      %s179 = sphi 0, %s179
      %s181 = sphi 0, %s179
      %s182 = sphi 0, %s181
      %s196 = sphi 0, %s182
      %s200 = sphi 0, %s200
      %s202 = sphi 0, %s200
      %s203 = sphi 0, %s202
      %s217 = sphi 0, %s203
      %s221 = sphi 0, %s221
      %s223 = sphi 0, %s221
      %s224 = sphi 0, %s223
      %s238 = sphi 0, %s224
      %s242 = sphi 0, %s242
      %s244 = sphi 0, %s242
      %s245 = sphi 0, %s244
      %s259 = sphi 0, %s245
      %s263 = sphi 0, %s263
      %s265 = sphi 0, %s263
      %s266 = sphi 0, %s265
      %s280 = sphi 0, %s266
      %s284 = sphi 0, %s284
      %s286 = sphi 0, %s284
      %s287 = sphi 0, %s286
      %s301 = sphi 0, %s287
      %s305 = sphi 0, %s305
      %s307 = sphi 0, %s305
      %s308 = sphi 0, %s307
      %s322 = sphi 0, %s308
      %s326 = sphi 0, %s326
      %s328 = sphi 0, %s326
      %s329 = sphi 0, %s328
      %s343 = sphi 0, %s329
      %s351 = sphi 0, %s353
      %s354 = sphi 0, %s351
      %s355 = sphi 0, %s354
      %s371 = sphi 0, %s355
    $region4: #{tpu_custom_call.1} parent=1 // loop_header_branch
      %36 = sbr.rel (%p34) target = $region8
    $region5: #{tpu_custom_call.1} parent=1 // loop_body
      %s38 = ssub.s32 %s33, 1
      %s39 = ssub.s32 %s33, 2
      %s49 = sadd.s32 1, %s42
      %p50 = scmp.ge.s32.totalorder %s49, 1
      %s51 = scalar_select %p50, 0, %s49
      %s52 = sadd.s32 1, %s41
      %s53 = scalar_select %p50, %s52, %s41
      %p54 = scmp.ge.s32.totalorder %s53, 1
      %s55 = scalar_select %p54, 0, %s53
      %s56 = sadd.s32 1, %s40
      %s57 = scalar_select %p54, %s56, %s40
      %p58 = scmp.ge.s32.totalorder %s57, 2
      %s59 = scalar_select %p58, 0, %s57
      %s60 = ssub.s32 %s40, %s59
      %s61 = ssub.s32 %s41, %s55
      %s62 = sor.u32 %s60, %s61
      %p63 = scmp.eq.s32.totalorder %s62, 0
      %s65 = sadd.s32 %s64, 1
      %s66 = scalar_select %p63, %s64, %s65
      %p69 = pneg %p63
      %p70 = scmp.eq.s32.totalorder %s33, 1
      %p71 = por %p69, %p70
      %p72 = scmp.ne.s32.totalorder %s64, %s67
      %p73 = scmp.eq.s32.totalorder %s33, 0
      %p74 = por %p72, %p73
      %p75 = scmp.ne.s32.totalorder %s64, %s67
      %p76 = scmp.eq.s32.totalorder %s38, 1
      %p77 = por %p75, %p76
      %p78 = scmp.ne.s32.totalorder %s67, %s68
      %p79 = scmp.eq.s32.totalorder %s38, 0
      %p80 = por %p78, %p79
      %p81 = scmp.ne.s32.totalorder %s67, %s68
      %p82 = scmp.eq.s32.totalorder %s39, 1
      %p83 = por %p81, %p82
      %p85 = scmp.ne.s32.totalorder %s68, %s84
      %p86 = scmp.eq.s32.totalorder %s39, 0
      %p87 = por %p85, %p86
      %s88 = ssub.s32 %s40, %s59
      %s89 = ssub.s32 %s42, %s51
      %s90 = sor.u32 %s88, %s89
      %p91 = scmp.eq.s32.totalorder %s90, 0
      %s93 = sadd.s32 %s92, 1
      %s94 = scalar_select %p91, %s92, %s93
      %p97 = pneg %p91
      %p98 = scmp.eq.s32.totalorder %s33, 1
      %p99 = por %p97, %p98
      %p100 = scmp.ne.s32.totalorder %s92, %s95
      %p101 = scmp.eq.s32.totalorder %s33, 0
      %p102 = por %p100, %p101
      %p103 = scmp.ne.s32.totalorder %s92, %s95
      %p104 = scmp.eq.s32.totalorder %s38, 1
      %p105 = por %p103, %p104
      %p106 = scmp.ne.s32.totalorder %s95, %s96
      %p107 = scmp.eq.s32.totalorder %s38, 0
      %p108 = por %p106, %p107
      %p109 = scmp.ne.s32.totalorder %s95, %s96
      %p110 = scmp.eq.s32.totalorder %s39, 1
      %p111 = por %p109, %p110
      %p113 = scmp.ne.s32.totalorder %s96, %s112
      %p114 = scmp.eq.s32.totalorder %s39, 0
      %p115 = por %p113, %p114
      %s117 = sadd.s32 %s116, 1
      %p120 = scmp.eq.s32.totalorder %s33, 1
      %p121 = scmp.ne.s32.totalorder %s116, %s118
      %p122 = scmp.eq.s32.totalorder %s33, 0
      %p123 = por %p121, %p122
      %p124 = scmp.ne.s32.totalorder %s116, %s118
      %p125 = scmp.eq.s32.totalorder %s38, 1
      %p126 = por %p124, %p125
      %p127 = scmp.ne.s32.totalorder %s118, %s119
      %p128 = scmp.eq.s32.totalorder %s38, 0
      %p129 = por %p127, %p128
      %p130 = scmp.ne.s32.totalorder %s118, %s119
      %p131 = scmp.eq.s32.totalorder %s39, 1
      %p132 = por %p130, %p131
      %p134 = scmp.ne.s32.totalorder %s119, %s133
      %p135 = scmp.eq.s32.totalorder %s39, 0
      %p136 = por %p134, %p135
      %s138 = sadd.s32 %s137, 1
      %p141 = scmp.eq.s32.totalorder %s33, 1
      %p142 = scmp.ne.s32.totalorder %s137, %s139
      %p143 = scmp.eq.s32.totalorder %s33, 0
      %p144 = por %p142, %p143
      %p145 = scmp.ne.s32.totalorder %s137, %s139
      %p146 = scmp.eq.s32.totalorder %s38, 1
      %p147 = por %p145, %p146
      %p148 = scmp.ne.s32.totalorder %s139, %s140
      %p149 = scmp.eq.s32.totalorder %s38, 0
      %p150 = por %p148, %p149
      %p151 = scmp.ne.s32.totalorder %s139, %s140
      %p152 = scmp.eq.s32.totalorder %s39, 1
      %p153 = por %p151, %p152
      %p155 = scmp.ne.s32.totalorder %s140, %s154
      %p156 = scmp.eq.s32.totalorder %s39, 0
      %p157 = por %p155, %p156
      %s159 = sadd.s32 %s158, 1
      %p162 = scmp.eq.s32.totalorder %s33, 1
      %p163 = scmp.ne.s32.totalorder %s158, %s160
      %p164 = scmp.eq.s32.totalorder %s33, 0
      %p165 = por %p163, %p164
      %p166 = scmp.ne.s32.totalorder %s158, %s160
      %p167 = scmp.eq.s32.totalorder %s38, 1
      %p168 = por %p166, %p167
      %p169 = scmp.ne.s32.totalorder %s160, %s161
      %p170 = scmp.eq.s32.totalorder %s38, 0
      %p171 = por %p169, %p170
      %p172 = scmp.ne.s32.totalorder %s160, %s161
      %p173 = scmp.eq.s32.totalorder %s39, 1
      %p174 = por %p172, %p173
      %p176 = scmp.ne.s32.totalorder %s161, %s175
      %p177 = scmp.eq.s32.totalorder %s39, 0
      %p178 = por %p176, %p177
      %s180 = sadd.s32 %s179, 1
      %p183 = scmp.eq.s32.totalorder %s33, 1
      %p184 = scmp.ne.s32.totalorder %s179, %s181
      %p185 = scmp.eq.s32.totalorder %s33, 0
      %p186 = por %p184, %p185
      %p187 = scmp.ne.s32.totalorder %s179, %s181
      %p188 = scmp.eq.s32.totalorder %s38, 1
      %p189 = por %p187, %p188
      %p190 = scmp.ne.s32.totalorder %s181, %s182
      %p191 = scmp.eq.s32.totalorder %s38, 0
      %p192 = por %p190, %p191
      %p193 = scmp.ne.s32.totalorder %s181, %s182
      %p194 = scmp.eq.s32.totalorder %s39, 1
      %p195 = por %p193, %p194
      %p197 = scmp.ne.s32.totalorder %s182, %s196
      %p198 = scmp.eq.s32.totalorder %s39, 0
      %p199 = por %p197, %p198
      %s201 = sadd.s32 %s200, 1
      %p204 = scmp.eq.s32.totalorder %s33, 1
      %p205 = scmp.ne.s32.totalorder %s200, %s202
      %p206 = scmp.eq.s32.totalorder %s33, 0
      %p207 = por %p205, %p206
      %p208 = scmp.ne.s32.totalorder %s200, %s202
      %p209 = scmp.eq.s32.totalorder %s38, 1
      %p210 = por %p208, %p209
      %p211 = scmp.ne.s32.totalorder %s202, %s203
      %p212 = scmp.eq.s32.totalorder %s38, 0
      %p213 = por %p211, %p212
      %p214 = scmp.ne.s32.totalorder %s202, %s203
      %p215 = scmp.eq.s32.totalorder %s39, 1
      %p216 = por %p214, %p215
      %p218 = scmp.ne.s32.totalorder %s203, %s217
      %p219 = scmp.eq.s32.totalorder %s39, 0
      %p220 = por %p218, %p219
      %s222 = sadd.s32 %s221, 1
      %p225 = scmp.eq.s32.totalorder %s33, 1
      %p226 = scmp.ne.s32.totalorder %s221, %s223
      %p227 = scmp.eq.s32.totalorder %s33, 0
      %p228 = por %p226, %p227
      %p229 = scmp.ne.s32.totalorder %s221, %s223
      %p230 = scmp.eq.s32.totalorder %s38, 1
      %p231 = por %p229, %p230
      %p232 = scmp.ne.s32.totalorder %s223, %s224
      %p233 = scmp.eq.s32.totalorder %s38, 0
      %p234 = por %p232, %p233
      %p235 = scmp.ne.s32.totalorder %s223, %s224
      %p236 = scmp.eq.s32.totalorder %s39, 1
      %p237 = por %p235, %p236
      %p239 = scmp.ne.s32.totalorder %s224, %s238
      %p240 = scmp.eq.s32.totalorder %s39, 0
      %p241 = por %p239, %p240
      %s243 = sadd.s32 %s242, 1
      %p246 = scmp.eq.s32.totalorder %s33, 1
      %p247 = scmp.ne.s32.totalorder %s242, %s244
      %p248 = scmp.eq.s32.totalorder %s33, 0
      %p249 = por %p247, %p248
      %p250 = scmp.ne.s32.totalorder %s242, %s244
      %p251 = scmp.eq.s32.totalorder %s38, 1
      %p252 = por %p250, %p251
      %p253 = scmp.ne.s32.totalorder %s244, %s245
      %p254 = scmp.eq.s32.totalorder %s38, 0
      %p255 = por %p253, %p254
      %p256 = scmp.ne.s32.totalorder %s244, %s245
      %p257 = scmp.eq.s32.totalorder %s39, 1
      %p258 = por %p256, %p257
      %p260 = scmp.ne.s32.totalorder %s245, %s259
      %p261 = scmp.eq.s32.totalorder %s39, 0
      %p262 = por %p260, %p261
      %s264 = sadd.s32 %s263, 1
      %p267 = scmp.eq.s32.totalorder %s33, 1
      %p268 = scmp.ne.s32.totalorder %s263, %s265
      %p269 = scmp.eq.s32.totalorder %s33, 0
      %p270 = por %p268, %p269
      %p271 = scmp.ne.s32.totalorder %s263, %s265
      %p272 = scmp.eq.s32.totalorder %s38, 1
      %p273 = por %p271, %p272
      %p274 = scmp.ne.s32.totalorder %s265, %s266
      %p275 = scmp.eq.s32.totalorder %s38, 0
      %p276 = por %p274, %p275
      %p277 = scmp.ne.s32.totalorder %s265, %s266
      %p278 = scmp.eq.s32.totalorder %s39, 1
      %p279 = por %p277, %p278
      %p281 = scmp.ne.s32.totalorder %s266, %s280
      %p282 = scmp.eq.s32.totalorder %s39, 0
      %p283 = por %p281, %p282
      %s285 = sadd.s32 %s284, 1
      %p288 = scmp.eq.s32.totalorder %s33, 1
      %p289 = scmp.ne.s32.totalorder %s284, %s286
      %p290 = scmp.eq.s32.totalorder %s33, 0
      %p291 = por %p289, %p290
      %p292 = scmp.ne.s32.totalorder %s284, %s286
      %p293 = scmp.eq.s32.totalorder %s38, 1
      %p294 = por %p292, %p293
      %p295 = scmp.ne.s32.totalorder %s286, %s287
      %p296 = scmp.eq.s32.totalorder %s38, 0
      %p297 = por %p295, %p296
      %p298 = scmp.ne.s32.totalorder %s286, %s287
      %p299 = scmp.eq.s32.totalorder %s39, 1
      %p300 = por %p298, %p299
      %p302 = scmp.ne.s32.totalorder %s287, %s301
      %p303 = scmp.eq.s32.totalorder %s39, 0
      %p304 = por %p302, %p303
      %s306 = sadd.s32 %s305, 1
      %p309 = scmp.eq.s32.totalorder %s33, 1
      %p310 = scmp.ne.s32.totalorder %s305, %s307
      %p311 = scmp.eq.s32.totalorder %s33, 0
      %p312 = por %p310, %p311
      %p313 = scmp.ne.s32.totalorder %s305, %s307
      %p314 = scmp.eq.s32.totalorder %s38, 1
      %p315 = por %p313, %p314
      %p316 = scmp.ne.s32.totalorder %s307, %s308
      %p317 = scmp.eq.s32.totalorder %s38, 0
      %p318 = por %p316, %p317
      %p319 = scmp.ne.s32.totalorder %s307, %s308
      %p320 = scmp.eq.s32.totalorder %s39, 1
      %p321 = por %p319, %p320
      %p323 = scmp.ne.s32.totalorder %s308, %s322
      %p324 = scmp.eq.s32.totalorder %s39, 0
      %p325 = por %p323, %p324
      %s327 = sadd.s32 %s326, 1
      %p330 = scmp.eq.s32.totalorder %s33, 1
      %p331 = scmp.ne.s32.totalorder %s326, %s328
      %p332 = scmp.eq.s32.totalorder %s33, 0
      %p333 = por %p331, %p332
      %p334 = scmp.ne.s32.totalorder %s326, %s328
      %p335 = scmp.eq.s32.totalorder %s38, 1
      %p336 = por %p334, %p335
      %p337 = scmp.ne.s32.totalorder %s328, %s329
      %p338 = scmp.eq.s32.totalorder %s38, 0
      %p339 = por %p337, %p338
      %p340 = scmp.ne.s32.totalorder %s328, %s329
      %p341 = scmp.eq.s32.totalorder %s39, 1
      %p342 = por %p340, %p341
      %p344 = scmp.ne.s32.totalorder %s329, %s343
      %p345 = scmp.eq.s32.totalorder %s39, 0
      %p346 = por %p344, %p345
      %s347 = ssub.s32 %s40, %s59
      %s348 = ssub.s32 %s41, %s55
      %s349 = sor.u32 %s347, %s348
      %p350 = scmp.eq.s32.totalorder %s349, 0
      %s352 = sadd.s32 %s351, 1
      %s353 = scalar_select %p350, %s351, %s352
      %p356 = pneg %p350
      %p357 = scmp.eq.s32.totalorder %s33, 1
      %p358 = por %p356, %p357
      %p359 = scmp.ne.s32.totalorder %s351, %s354
      %p360 = scmp.eq.s32.totalorder %s33, 0
      %p361 = por %p359, %p360
      %p362 = scmp.ne.s32.totalorder %s351, %s354
      %p363 = scmp.eq.s32.totalorder %s38, 1
      %p364 = por %p362, %p363
      %p365 = scmp.ne.s32.totalorder %s354, %s355
      %p366 = scmp.eq.s32.totalorder %s38, 0
      %p367 = por %p365, %p366
      %p368 = scmp.ne.s32.totalorder %s354, %s355
      %p369 = scmp.eq.s32.totalorder %s39, 1
      %p370 = por %p368, %p369
      %p372 = scmp.ne.s32.totalorder %s355, %s371
      %p373 = scmp.eq.s32.totalorder %s39, 0
      %p374 = por %p372, %p373
      %p375 = scmp.le.s32.totalorder 1, %s33
      %p376 = scmp.lt.s32.totalorder %s33, 3
      %p377 = pnand %p375, %p376
      %p378 = pneg %p377
      // Predicated region
      $region9: #{tpu_custom_call.1} parent=5 // pred_check
        _
      $region10: #{tpu_custom_call.1} parent=5 // pred_check_branch
        %380 = sbr.rel (%p377) target = $region12
      $region11: #{tpu_custom_call.1} parent=5 // pred_region
        %s381 = ssub.s32 %s33, 1
        // Predicated region
        $region13: #{tpu_custom_call.1} parent=11 // pred_check
          %p382 = pneg %p129
        $region14: #{tpu_custom_call.1} parent=11 // pred_check_branch
          %384 = sbr.rel (%p382) target = $region16
        $region15: #{tpu_custom_call.1} parent=11 // pred_region
          %s386 = ssub.s32 32, 32
          %387 = vsyncadd [#allocation10], %s386
          %s389 = sshll.u32 [#allocation11], 4
          %s390 = int_to_ptr.vmem [resolvable:$true] %s389
          %392 = dma.hbm_to_vmem [thread:$0]  %s2, 32, %s390, [#allocation10]
        $region16: #{tpu_custom_call.1} parent=11 // pred_fallthru
          _
        // Predicated region
        $region17: #{tpu_custom_call.1} parent=11 // pred_check
          %p393 = pneg %p150
        $region18: #{tpu_custom_call.1} parent=11 // pred_check_branch
          %395 = sbr.rel (%p393) target = $region20
        $region19: #{tpu_custom_call.1} parent=11 // pred_region
          %s397 = ssub.s32 32, 32
          %398 = vsyncadd [#allocation13], %s397
          %s400 = sshll.u32 [#allocation12], 4
          %s401 = int_to_ptr.vmem [resolvable:$true] %s400
          %403 = dma.hbm_to_vmem [thread:$0]  %s3, 32, %s401, [#allocation13]
        $region20: #{tpu_custom_call.1} parent=11 // pred_fallthru
          _
        // Predicated region
        $region21: #{tpu_custom_call.1} parent=11 // pred_check
          %p404 = pneg %p171
        $region22: #{tpu_custom_call.1} parent=11 // pred_check_branch
          %406 = sbr.rel (%p404) target = $region24
        $region23: #{tpu_custom_call.1} parent=11 // pred_region
          %s408 = ssub.s32 256, 256
          %409 = vsyncadd [#allocation13], %s408
          %s410 = sshll.u32 [#allocation14], 4
          %s411 = int_to_ptr.vmem [resolvable:$true] %s410
          %416 = dma.hbm_to_vmem [thread:$0]  %s4, 256, %s411, [#allocation13], 64, 64, 4
        $region24: #{tpu_custom_call.1} parent=11 // pred_fallthru
          _
        // Predicated region
        $region25: #{tpu_custom_call.1} parent=11 // pred_check
          %p417 = pneg %p192
        $region26: #{tpu_custom_call.1} parent=11 // pred_check_branch
          %419 = sbr.rel (%p417) target = $region28
        $region27: #{tpu_custom_call.1} parent=11 // pred_region
          %s421 = ssub.s32 256, 256
          %422 = vsyncadd [#allocation16], %s421
          %s423 = sshll.u32 [#allocation15], 4
          %s424 = int_to_ptr.vmem [resolvable:$true] %s423
          %429 = dma.hbm_to_vmem [thread:$0]  %s5, 256, %s424, [#allocation16], 64, 64, 4
        $region28: #{tpu_custom_call.1} parent=11 // pred_fallthru
          _
        // Predicated region
        $region29: #{tpu_custom_call.1} parent=11 // pred_check
          %p430 = pneg %p213
        $region30: #{tpu_custom_call.1} parent=11 // pred_check_branch
          %432 = sbr.rel (%p430) target = $region32
        $region31: #{tpu_custom_call.1} parent=11 // pred_region
          %s434 = ssub.s32 16, 16
          %435 = vsyncadd [#allocation16], %s434
          %s437 = sshll.u32 [#allocation17], 4
          %s438 = int_to_ptr.vmem [resolvable:$true] %s437
          %440 = dma.hbm_to_vmem [thread:$0]  %s6, 16, %s438, [#allocation16]
        $region32: #{tpu_custom_call.1} parent=11 // pred_fallthru
          _
        // Predicated region
        $region33: #{tpu_custom_call.1} parent=11 // pred_check
          %p441 = pneg %p234
        $region34: #{tpu_custom_call.1} parent=11 // pred_check_branch
          %443 = sbr.rel (%p441) target = $region36
        $region35: #{tpu_custom_call.1} parent=11 // pred_region
          %s445 = ssub.s32 256, 256
          %446 = vsyncadd [#allocation19], %s445
          %s447 = sshll.u32 [#allocation18], 4
          %s448 = int_to_ptr.vmem [resolvable:$true] %s447
          %453 = dma.hbm_to_vmem [thread:$0]  %s7, 256, %s448, [#allocation19], 64, 64, 4
        $region36: #{tpu_custom_call.1} parent=11 // pred_fallthru
          _
        // Predicated region
        $region37: #{tpu_custom_call.1} parent=11 // pred_check
          %p454 = pneg %p255
        $region38: #{tpu_custom_call.1} parent=11 // pred_check_branch
          %456 = sbr.rel (%p454) target = $region40
        $region39: #{tpu_custom_call.1} parent=11 // pred_region
          %s458 = ssub.s32 16, 16
          %459 = vsyncadd [#allocation19], %s458
          %s461 = sshll.u32 [#allocation20], 4
          %s462 = int_to_ptr.vmem [resolvable:$true] %s461
          %464 = dma.hbm_to_vmem [thread:$0]  %s8, 16, %s462, [#allocation19]
        $region40: #{tpu_custom_call.1} parent=11 // pred_fallthru
          _
        // Predicated region
        $region41: #{tpu_custom_call.1} parent=11 // pred_check
          %p465 = pneg %p276
        $region42: #{tpu_custom_call.1} parent=11 // pred_check_branch
          %467 = sbr.rel (%p465) target = $region44
        $region43: #{tpu_custom_call.1} parent=11 // pred_region
          %s469 = ssub.s32 256, 256
          %470 = vsyncadd [#allocation22], %s469
          %s471 = sshll.u32 [#allocation21], 4
          %s472 = int_to_ptr.vmem [resolvable:$true] %s471
          %477 = dma.hbm_to_vmem [thread:$0]  %s9, 256, %s472, [#allocation22], 64, 64, 4
        $region44: #{tpu_custom_call.1} parent=11 // pred_fallthru
          _
        // Predicated region
        $region45: #{tpu_custom_call.1} parent=11 // pred_check
          %p478 = pneg %p297
        $region46: #{tpu_custom_call.1} parent=11 // pred_check_branch
          %480 = sbr.rel (%p478) target = $region48
        $region47: #{tpu_custom_call.1} parent=11 // pred_region
          %s482 = ssub.s32 16, 16
          %483 = vsyncadd [#allocation22], %s482
          %s485 = sshll.u32 [#allocation23], 4
          %s486 = int_to_ptr.vmem [resolvable:$true] %s485
          %488 = dma.hbm_to_vmem [thread:$0]  %s10, 16, %s486, [#allocation22]
        $region48: #{tpu_custom_call.1} parent=11 // pred_fallthru
          _
        // Predicated region
        $region49: #{tpu_custom_call.1} parent=11 // pred_check
          %p489 = pneg %p318
        $region50: #{tpu_custom_call.1} parent=11 // pred_check_branch
          %491 = sbr.rel (%p489) target = $region52
        $region51: #{tpu_custom_call.1} parent=11 // pred_region
          %s493 = ssub.s32 512, 512
          %494 = vsyncadd [#allocation25], %s493
          %s495 = sshll.u32 [#allocation24], 4
          %s496 = int_to_ptr.vmem [resolvable:$true] %s495
          %501 = dma.hbm_to_vmem [thread:$0]  %s11, 512, %s496, [#allocation25], 64, 64, 4
        $region52: #{tpu_custom_call.1} parent=11 // pred_fallthru
          _
        // Predicated region
        $region53: #{tpu_custom_call.1} parent=11 // pred_check
          %p502 = pneg %p339
        $region54: #{tpu_custom_call.1} parent=11 // pred_check_branch
          %504 = sbr.rel (%p502) target = $region56
        $region55: #{tpu_custom_call.1} parent=11 // pred_region
          %s506 = ssub.s32 16, 16
          %507 = vsyncadd [#allocation25], %s506
          %s509 = sshll.u32 [#allocation26], 4
          %s510 = int_to_ptr.vmem [resolvable:$true] %s509
          %512 = dma.hbm_to_vmem [thread:$0]  %s12, 16, %s510, [#allocation25]
        $region56: #{tpu_custom_call.1} parent=11 // pred_fallthru
          _
      $region12: #{tpu_custom_call.1} parent=5 // pred_fallthru
        _
      %p513 = scmp.lt.s32.totalorder %s33, 2
      // Predicated region
      $region57: #{tpu_custom_call.1} parent=5 // pred_check
        %p514 = pneg %p513
      $region58: #{tpu_custom_call.1} parent=5 // pred_check_branch
        %516 = sbr.rel (%p514) target = $region60
      $region59: #{tpu_custom_call.1} parent=5 // pred_region
        // Predicated region
        $region61: #{tpu_custom_call.1} parent=59 // pred_check
          %p517 = pneg %p74
        $region62: #{tpu_custom_call.1} parent=59 // pred_check_branch
          %519 = sbr.rel (%p517) target = $region64
        $region63: #{tpu_custom_call.1} parent=59 // pred_region
          %s520 = sand.u32 %s64, 1
          %s521 = scalar_lea.sflag [#allocation7], %s520
          %s522 = sand.u32 %s64, 1
          %s523 = smul.addr %s522, 8
          %s524 = scalar_lea.vmem [#allocation6], %s523
          %s526 = ssub.s32 128, 128
          %527 = vsyncadd %s521, %s526
          %s528 = sadd.s32 %s41, %s40
          %s529 = smul.addr %s528, 128
          %s530 = scalar_lea.hbm %s0, %s529
          %s532 = sshll.u32 %s524, 4
          %s533 = int_to_ptr.vmem [resolvable:$true] %s532
          %535 = dma.hbm_to_vmem [thread:$0]  %s530, 128, %s533, %s521
        $region64: #{tpu_custom_call.1} parent=59 // pred_fallthru
          _
        // Predicated region
        $region65: #{tpu_custom_call.1} parent=59 // pred_check
          %p536 = pneg %p102
        $region66: #{tpu_custom_call.1} parent=59 // pred_check_branch
          %538 = sbr.rel (%p536) target = $region68
        $region67: #{tpu_custom_call.1} parent=59 // pred_region
          %s539 = sand.u32 %s33, 1
          %s540 = scalar_lea.sflag [#allocation10], %s539
          %s541 = sand.u32 %s92, 1
          %s542 = smul.addr %s541, 8
          %s543 = scalar_lea.vmem [#allocation9], %s542
          %s545 = ssub.s32 128, 128
          %546 = vsyncadd %s540, %s545
          %s547 = sadd.s32 %s42, %s40
          %s548 = smul.addr %s547, 128
          %s549 = scalar_lea.hbm %s1, %s548
          %s551 = sshll.u32 %s543, 4
          %s552 = int_to_ptr.vmem [resolvable:$true] %s551
          %554 = dma.hbm_to_vmem [thread:$0]  %s549, 128, %s552, %s540
        $region68: #{tpu_custom_call.1} parent=59 // pred_fallthru
          _
      $region60: #{tpu_custom_call.1} parent=5 // pred_fallthru
        _
      %p555 = scmp.le.s32.totalorder 1, %s33
      %p556 = scmp.lt.s32.totalorder %s33, 3
      %p557 = pnand %p555, %p556
      %p558 = pneg %p557
      // Predicated region
      $region69: #{tpu_custom_call.1} parent=5 // pred_check
        _
      $region70: #{tpu_custom_call.1} parent=5 // pred_check_branch
        %560 = sbr.rel (%p557) target = $region72
      $region71: #{tpu_custom_call.1} parent=5 // pred_region
        %s561 = ssub.s32 %s33, 1
        %s562 = sand.u32 %s67, 1
        %s563 = scalar_lea.sflag [#allocation7], %s562
        %s564 = sand.u32 %s67, 1
        %s565 = smul.addr %s564, 8
        %s566 = scalar_lea.vmem [#allocation6], %s565
        // Predicated region
        $region73: #{tpu_custom_call.1} parent=71 // pred_check
          %p567 = pneg %p80
        $region74: #{tpu_custom_call.1} parent=71 // pred_check_branch
          %569 = sbr.rel (%p567) target = $region76
        $region75: #{tpu_custom_call.1} parent=71 // pred_region
          %570 = dma.done %s563, 128
        $region76: #{tpu_custom_call.1} parent=71 // pred_fallthru
          _
        %s571 = sand.u32 %s38, 1
        %s572 = scalar_lea.sflag [#allocation10], %s571
        %s573 = sand.u32 %s95, 1
        %s574 = smul.addr %s573, 8
        %s575 = scalar_lea.vmem [#allocation9], %s574
        // Predicated region
        $region77: #{tpu_custom_call.1} parent=71 // pred_check
          %p576 = pneg %p108
        $region78: #{tpu_custom_call.1} parent=71 // pred_check_branch
          %578 = sbr.rel (%p576) target = $region80
        $region79: #{tpu_custom_call.1} parent=71 // pred_region
          %579 = dma.done %s572, 128
        $region80: #{tpu_custom_call.1} parent=71 // pred_fallthru
          _
        // Predicated region
        $region81: #{tpu_custom_call.1} parent=71 // pred_check
          %p580 = pneg %p129
        $region82: #{tpu_custom_call.1} parent=71 // pred_check_branch
          %582 = sbr.rel (%p580) target = $region84
        $region83: #{tpu_custom_call.1} parent=71 // pred_region
          %583 = dma.done [#allocation10], 32
        $region84: #{tpu_custom_call.1} parent=71 // pred_fallthru
          _
        // Predicated region
        $region85: #{tpu_custom_call.1} parent=71 // pred_check
          %p584 = pneg %p150
        $region86: #{tpu_custom_call.1} parent=71 // pred_check_branch
          %586 = sbr.rel (%p584) target = $region88
        $region87: #{tpu_custom_call.1} parent=71 // pred_region
          %587 = dma.done [#allocation13], 32
        $region88: #{tpu_custom_call.1} parent=71 // pred_fallthru
          _
        // Predicated region
        $region89: #{tpu_custom_call.1} parent=71 // pred_check
          %p588 = pneg %p171
        $region90: #{tpu_custom_call.1} parent=71 // pred_check_branch
          %590 = sbr.rel (%p588) target = $region92
        $region91: #{tpu_custom_call.1} parent=71 // pred_region
          %591 = dma.done [#allocation13], 256
        $region92: #{tpu_custom_call.1} parent=71 // pred_fallthru
          _
        // Predicated region
        $region93: #{tpu_custom_call.1} parent=71 // pred_check
          %p592 = pneg %p192
        $region94: #{tpu_custom_call.1} parent=71 // pred_check_branch
          %594 = sbr.rel (%p592) target = $region96
        $region95: #{tpu_custom_call.1} parent=71 // pred_region
          %595 = dma.done [#allocation16], 256
        $region96: #{tpu_custom_call.1} parent=71 // pred_fallthru
          _
        // Predicated region
        $region97: #{tpu_custom_call.1} parent=71 // pred_check
          %p596 = pneg %p213
        $region98: #{tpu_custom_call.1} parent=71 // pred_check_branch
          %598 = sbr.rel (%p596) target = $region100
        $region99: #{tpu_custom_call.1} parent=71 // pred_region
          %599 = dma.done [#allocation16], 16
        $region100: #{tpu_custom_call.1} parent=71 // pred_fallthru
          _
        // Predicated region
        $region101: #{tpu_custom_call.1} parent=71 // pred_check
          %p600 = pneg %p234
        $region102: #{tpu_custom_call.1} parent=71 // pred_check_branch
          %602 = sbr.rel (%p600) target = $region104
        $region103: #{tpu_custom_call.1} parent=71 // pred_region
          %603 = dma.done [#allocation19], 256
        $region104: #{tpu_custom_call.1} parent=71 // pred_fallthru
          _
        // Predicated region
        $region105: #{tpu_custom_call.1} parent=71 // pred_check
          %p604 = pneg %p255
        $region106: #{tpu_custom_call.1} parent=71 // pred_check_branch
          %606 = sbr.rel (%p604) target = $region108
        $region107: #{tpu_custom_call.1} parent=71 // pred_region
          %607 = dma.done [#allocation19], 16
        $region108: #{tpu_custom_call.1} parent=71 // pred_fallthru
          _
        // Predicated region
        $region109: #{tpu_custom_call.1} parent=71 // pred_check
          %p608 = pneg %p276
        $region110: #{tpu_custom_call.1} parent=71 // pred_check_branch
          %610 = sbr.rel (%p608) target = $region112
        $region111: #{tpu_custom_call.1} parent=71 // pred_region
          %611 = dma.done [#allocation22], 256
        $region112: #{tpu_custom_call.1} parent=71 // pred_fallthru
          _
        // Predicated region
        $region113: #{tpu_custom_call.1} parent=71 // pred_check
          %p612 = pneg %p297
        $region114: #{tpu_custom_call.1} parent=71 // pred_check_branch
          %614 = sbr.rel (%p612) target = $region116
        $region115: #{tpu_custom_call.1} parent=71 // pred_region
          %615 = dma.done [#allocation22], 16
        $region116: #{tpu_custom_call.1} parent=71 // pred_fallthru
          _
        // Predicated region
        $region117: #{tpu_custom_call.1} parent=71 // pred_check
          %p616 = pneg %p318
        $region118: #{tpu_custom_call.1} parent=71 // pred_check_branch
          %618 = sbr.rel (%p616) target = $region120
        $region119: #{tpu_custom_call.1} parent=71 // pred_region
          %619 = dma.done [#allocation25], 512
        $region120: #{tpu_custom_call.1} parent=71 // pred_fallthru
          _
        // Predicated region
        $region121: #{tpu_custom_call.1} parent=71 // pred_check
          %p620 = pneg %p339
        $region122: #{tpu_custom_call.1} parent=71 // pred_check_branch
          %622 = sbr.rel (%p620) target = $region124
        $region123: #{tpu_custom_call.1} parent=71 // pred_region
          %623 = dma.done [#allocation25], 16
        $region124: #{tpu_custom_call.1} parent=71 // pred_fallthru
          _
        %s624 = sand.u32 %s67, 1
        %s625 = scalar_lea.sflag [#allocation7], %s624
        %s626 = sand.u32 %s67, 1
        %s627 = smul.addr %s626, 8
        %s628 = scalar_lea.vmem [#allocation6], %s627
        %p629 = pneg %p80
        %p630 = pneg %p77
        %s631 = sand.u32 %s38, 1
        %s632 = scalar_lea.sflag [#allocation10], %s631
        %s633 = sand.u32 %s95, 1
        %s634 = smul.addr %s633, 8
        %s635 = scalar_lea.vmem [#allocation9], %s634
        %p636 = pneg %p108
        %p637 = pneg %p105
        %p638 = pneg %p129
        %p639 = pneg %p126
        %p640 = pneg %p150
        %p641 = pneg %p147
        %p642 = pneg %p171
        %p643 = pneg %p168
        %p644 = pneg %p192
        %p645 = pneg %p189
        %p646 = pneg %p213
        %p647 = pneg %p210
        %p648 = pneg %p234
        %p649 = pneg %p231
        %p650 = pneg %p255
        %p651 = pneg %p252
        %p652 = pneg %p276
        %p653 = pneg %p273
        %p654 = pneg %p297
        %p655 = pneg %p294
        %p656 = pneg %p318
        %p657 = pneg %p315
        %p658 = pneg %p339
        %p659 = pneg %p336
        %p660 = pneg %p367
        %p661 = pneg %p364
        %s662 = sand.u32 %s354, 1
        %s663 = scalar_lea.sflag [#allocation8], %s662
        %s664 = sand.u32 %s354, 1
        %s665 = smul.addr %s664, 8
        %s666 = scalar_lea.vmem [#allocation27], %s665
        %v668 = vld [vmem:[#allocation11] sm:$0x1]
        %v669 = vld [vmem:[#allocation11 + $0x1] sm:$0x1]
        %p670 = scmp.eq.s32.totalorder %s45, 0
        // Predicated region
        $region125: #{tpu_custom_call.1} parent=71 // pred_check
          %p671 = pneg %p670
        $region126: #{tpu_custom_call.1} parent=71 // pred_check_branch
          %673 = sbr.rel (%p671) target = $region128
        $region127: #{tpu_custom_call.1} parent=71 // pred_region
          %v674 = vld [vmem:[%s566] sm:$0xff]
          %vm675 = vcmask 261120
          %v676 = vsel %vm675, %v674, 0.0
          %677 = vadd.xlane.f32.xlu0 %v676
          %v678 = vpop.xlane.xlu0 %677
          %v679 = vrcp.pop 32.0
          %v680 = vmul.f32 %v678, %v679
          %v681 = vsub.f32 %v674, %v680
          %v682 = vmul.f32 %v681, %v681
          %v683 = vsel %vm675, %v682, 0.0
          %684 = vadd.xlane.f32.xlu0 %v683
          %v685 = vpop.xlane.xlu0 %684
          %v686 = vmul.f32 %v685, %v679
          %v687 = vadd.f32 %v686, 1e-05
          %v688 = vrsqrt.pop %v687
          %v689 = vmul.f32 %v681, %v688
          %v690 = vlaneseq
          %v691 = vshrl.u32 %v690, 7
          %v692 = vsub.s32 0, %v691
          %v693 = vrot.slane %v668, %v692
          %v694 = vmul.f32 %v689, %v693
          %v695 = vlaneseq
          %v696 = vshrl.u32 %v695, 7
          %v697 = vsub.s32 0, %v696
          %v698 = vrot.slane %v669, %v697
          %v699 = vadd.f32 %v694, %v698
          %v700 = vpack.c.bf16 %v699, %v699
          %v701 = vld [vmem:[#allocation14] sm:$0xf]
          %v702 = vld [vmem:[#allocation14 + $0x4] sm:$0xf]
          %v703 = vld [vmem:[#allocation14 + $0x8] sm:$0xf]
          %v704 = vld [vmem:[#allocation14 + $0xc] sm:$0xf]
          %v705 = vld [vmem:[#allocation17] sm:$0x1]
          %v707 = vlaneseq
          %v708 = vshrl.u32 %v707, 7
          %v709 = vsub.s32 0, %v708
          %v710 = vrot.slane %v705, %v709
          %v716 = vunpack.c.l.b16 %v701
          %v717 = vunpack.c.l.b16 %v702
          %v718 = vunpack.c.l.b16 %v703
          %v719 = vunpack.c.l.b16 %v704
          %v720 = vpack.c.b16 %v717, %v716
          %v721 = vpack.c.b16 %v719, %v718
          %v725 = vsel %vm675, %v700, 0
          %727 = vmatprep.subr.bf16.mxu0 0
          %728 = vmatpush1.bf16.msra.mxu0 %v720
          %729 = vmatprep.subr.bf16.mxu0 0
          %730 = vmatpush1.bf16.msra.mxu0 %v721
          %731 = vmatprep.subr.bf16.mxu0 0
          %732 = vmatpush1.bf16.msra.mxu0 0
          %733 = vmatprep.subr.bf16.mxu0 0
          %734 = vmatpush1.bf16.msra.mxu0 0
          %735 = vmatprep.subr.bf16.mxu0 0
          %736 = vmatpush1.bf16.msra.mxu0 0
          %737 = vmatprep.subr.bf16.mxu0 0
          %738 = vmatpush1.bf16.msra.mxu0 0
          %739 = vmatprep.subr.bf16.mxu0 0
          %740 = vmatpush1.bf16.msra.mxu0 0
          %741 = vmatprep.subr.bf16.mxu0 0
          %742 = vmatpush1.bf16.msra.mxu0 0
          %743 = vmatprep.subr.bf16.mxu0 0
          %744 = vmatpush1.bf16.msra.mxu0 0
          %745 = vmatprep.subr.bf16.mxu0 0
          %746 = vmatpush1.bf16.msra.mxu0 0
          %747 = vmatprep.subr.bf16.mxu0 0
          %748 = vmatpush1.bf16.msra.mxu0 0
          %749 = vmatprep.subr.bf16.mxu0 0
          %750 = vmatpush1.bf16.msra.mxu0 0
          %751 = vmatprep.subr.bf16.mxu0 0
          %752 = vmatpush1.bf16.msra.mxu0 0
          %753 = vmatprep.subr.bf16.mxu0 0
          %754 = vmatpush1.bf16.msra.mxu0 0
          %755 = vmatprep.subr.bf16.mxu0 0
          %756 = vmatpush1.bf16.msra.mxu0 0
          %757 = vmatprep.subr.bf16.mxu0 0
          %758 = vmatpush1.bf16.msra.mxu0 0
          %759 = vmatprep.mubr.bf16.mxu0 0
          %760 = vmatmul.mubr.bf16.gmra.mrb[0].mxu0 %v725
          %v761 = vpop.f32.mrb[0].mxu0
          %v762 = vadd.f32 %v710, %v761
          %v763 = vpop.f32.mrb[0].mxu0
          %v764 = vpop.f32.mrb[0].mxu0
          %v765 = vpop.f32.mrb[0].mxu0
          %766 = vdwg.mxu0
          %v767 = vmul.f32 %v762, 0.35355338
          %769 = vrot.lane.b32.xlu0 %v767, 120
          %v770 = vpop.permute.xlu0 %769
          %772 = vrot.lane.b32.xlu0 %v767, 112
          %v773 = vpop.permute.xlu0 %772
          %775 = vrot.lane.b32.xlu0 %v767, 104
          %v776 = vpop.permute.xlu0 %775
          %v778 = vcombine.low %v767, %v773
          %v779 = vcombine.high %v767, %v773
          %v781 = vunpack.c.l.s4 1983009808
          %v782 = vunpack.c.0.s8 %v781
          %v783 = vlaneseq
          %v784 = vshrl.u32 %v783, 7
          %v785 = vsub.s32 %v782, %v784
          %v786 = vrot.slane %v778, %v785
          %v788 = vunpack.c.l.s4 1983009808
          %v789 = vunpack.c.0.s8 %v788
          %v790 = vlaneseq
          %v791 = vshrl.u32 %v790, 7
          %v792 = vsub.s32 %v789, %v791
          %v793 = vrot.slane %v779, %v792
          %v794 = vcombine.low %v770, %v776
          %v795 = vcombine.high %v770, %v776
          %v797 = vunpack.c.l.s4 1983009808
          %v798 = vunpack.c.0.s8 %v797
          %v799 = vlaneseq
          %v800 = vshrl.u32 %v799, 7
          %v801 = vsub.s32 %v798, %v800
          %v802 = vrot.slane %v794, %v801
          %v804 = vunpack.c.l.s4 1983009808
          %v805 = vunpack.c.0.s8 %v804
          %v806 = vlaneseq
          %v807 = vshrl.u32 %v806, 7
          %v808 = vsub.s32 %v805, %v807
          %v809 = vrot.slane %v795, %v808
          %v810 = vcombine.low %v786, %v802
          %v811 = vcombine.high %v786, %v802
          %v813 = vunpack.c.l.s4 1934713408
          %v814 = vunpack.c.0.s8 %v813
          %v815 = vlaneseq
          %v816 = vshrl.u32 %v815, 7
          %v817 = vsub.s32 %v814, %v816
          %v818 = vrot.slane %v810, %v817
          %v820 = vunpack.c.l.s4 1934713408
          %v821 = vunpack.c.0.s8 %v820
          %v822 = vlaneseq
          %v823 = vshrl.u32 %v822, 7
          %v824 = vsub.s32 %v821, %v823
          %v825 = vrot.slane %v811, %v824
          %v826 = vcombine.low %v793, %v809
          %v827 = vcombine.high %v793, %v809
          %v829 = vunpack.c.l.s4 1934713408
          %v830 = vunpack.c.0.s8 %v829
          %v831 = vlaneseq
          %v832 = vshrl.u32 %v831, 7
          %v833 = vsub.s32 %v830, %v832
          %v834 = vrot.slane %v826, %v833
          %v836 = vunpack.c.l.s4 1934713408
          %v837 = vunpack.c.0.s8 %v836
          %v838 = vlaneseq
          %v839 = vshrl.u32 %v838, 7
          %v840 = vsub.s32 %v837, %v839
          %v841 = vrot.slane %v827, %v840
          %v842 = vcombine.high %v818, 0.0
          %v843 = vcombine.high %v825, 0.0
          %v844 = vcombine.high %v834, 0.0
          %v845 = vcombine.high %v841, 0.0
          %v846 = vcombine.low %v818, %v825
          %v848 = vunpack.c.l.s4 1983009808
          %v849 = vunpack.c.0.s8 %v848
          %v850 = vlaneseq
          %v851 = vshrl.u32 %v850, 7
          %v852 = vsub.s32 %v849, %v851
          %v853 = vrot.slane %v846, %v852
          %v854 = vcombine.low %v842, %v843
          %v856 = vunpack.c.l.s4 1983009808
          %v857 = vunpack.c.0.s8 %v856
          %v858 = vlaneseq
          %v859 = vshrl.u32 %v858, 7
          %v860 = vsub.s32 %v857, %v859
          %v861 = vrot.slane %v854, %v860
          %v862 = vcombine.low %v834, %v841
          %v864 = vunpack.c.l.s4 1983009808
          %v865 = vunpack.c.0.s8 %v864
          %v866 = vlaneseq
          %v867 = vshrl.u32 %v866, 7
          %v868 = vsub.s32 %v865, %v867
          %v869 = vrot.slane %v862, %v868
          %v870 = vcombine.low %v844, %v845
          %v872 = vunpack.c.l.s4 1983009808
          %v873 = vunpack.c.0.s8 %v872
          %v874 = vlaneseq
          %v875 = vshrl.u32 %v874, 7
          %v876 = vsub.s32 %v873, %v875
          %v877 = vrot.slane %v870, %v876
          %v878 = vcombine.low %v853, %v861
          %v879 = vcombine.high %v853, %v861
          %v881 = vunpack.c.l.s4 1934713408
          %v882 = vunpack.c.0.s8 %v881
          %v883 = vlaneseq
          %v884 = vshrl.u32 %v883, 7
          %v885 = vsub.s32 %v882, %v884
          %v886 = vrot.slane %v878, %v885
          %v888 = vunpack.c.l.s4 1934713408
          %v889 = vunpack.c.0.s8 %v888
          %v890 = vlaneseq
          %v891 = vshrl.u32 %v890, 7
          %v892 = vsub.s32 %v889, %v891
          %v893 = vrot.slane %v879, %v892
          %v894 = vcombine.low %v869, %v877
          %v895 = vcombine.high %v869, %v877
          %v897 = vunpack.c.l.s4 1934713408
          %v898 = vunpack.c.0.s8 %v897
          %v899 = vlaneseq
          %v900 = vshrl.u32 %v899, 7
          %v901 = vsub.s32 %v898, %v900
          %v902 = vrot.slane %v894, %v901
          %v904 = vunpack.c.l.s4 1934713408
          %v905 = vunpack.c.0.s8 %v904
          %v906 = vlaneseq
          %v907 = vshrl.u32 %v906, 7
          %v908 = vsub.s32 %v905, %v907
          %v909 = vrot.slane %v895, %v908
          %v910 = vcombine.low %v886, %v902
          %v911 = vcombine.high %v886, %v902
          %v912 = vcombine.low %v893, %v909
          %v913 = vcombine.high %v893, %v909
          %v914 = vpack.c.bf16 %v910, %v910
          %v915 = vpack.c.bf16 %v911, %v911
          %v916 = vpack.c.bf16 %v912, %v912
          %v917 = vpack.c.bf16 %v913, %v913
          %vm918 = vcmask 60416
          %919 = vst.msk [vmem:[#allocation2] sm:$0xf] %vm918, %v914
          %920 = vst.msk [vmem:[#allocation2 + $0x4] sm:$0xf] %vm918, %v915
          %921 = vst.msk [vmem:[#allocation2 + $0x8] sm:$0xf] %vm918, %v916
          %922 = vst.msk [vmem:[#allocation2 + $0xc] sm:$0xf] %vm918, %v917
          %vm923 = vcmask 7168
          %924 = vst.msk [vmem:[#allocation3] sm:$0xff] %vm923, -inf
          %925 = vst.msk [vmem:[#allocation3 + $0x8] sm:$0xff] %vm923, -inf
          %926 = vst.msk [vmem:[#allocation3 + $0x10] sm:$0xff] %vm923, -inf
          %927 = vst.msk [vmem:[#allocation3 + $0x18] sm:$0xff] %vm923, -inf
          %928 = vst.msk [vmem:[#allocation4] sm:$0xff] %vm923, 0.0
          %929 = vst.msk [vmem:[#allocation4 + $0x8] sm:$0xff] %vm923, 0.0
          %930 = vst.msk [vmem:[#allocation4 + $0x10] sm:$0xff] %vm923, 0.0
          %931 = vst.msk [vmem:[#allocation4 + $0x18] sm:$0xff] %vm923, 0.0
          %vm932 = vcmask 64512
          %933 = vst.msk [vmem:[#allocation5] sm:$0xff] %vm932, 0.0
          %934 = vst.msk [vmem:[#allocation5 + $0x8] sm:$0xff] %vm932, 0.0
          %935 = vst.msk [vmem:[#allocation5 + $0x10] sm:$0xff] %vm932, 0.0
          %936 = vst.msk [vmem:[#allocation5 + $0x18] sm:$0xff] %vm932, 0.0
        $region128: #{tpu_custom_call.1} parent=71 // pred_fallthru
          _
        %v937 = vld [vmem:[%s575] sm:$0xff]
        %vm938 = vcmask 261120
        %v939 = vsel %vm938, %v937, 0.0
        %940 = vadd.xlane.f32.xlu0 %v939
        %v941 = vpop.xlane.xlu0 %940
        %v942 = vrcp.pop 32.0
        %v943 = vmul.f32 %v941, %v942
        %v944 = vsub.f32 %v937, %v943
        %v945 = vmul.f32 %v944, %v944
        %v946 = vsel %vm938, %v945, 0.0
        %947 = vadd.xlane.f32.xlu0 %v946
        %v948 = vpop.xlane.xlu0 %947
        %v949 = vmul.f32 %v948, %v942
        %v950 = vadd.f32 %v949, 1e-05
        %v951 = vrsqrt.pop %v950
        %v952 = vmul.f32 %v944, %v951
        %v953 = vlaneseq
        %v954 = vshrl.u32 %v953, 7
        %v955 = vsub.s32 0, %v954
        %v956 = vrot.slane %v668, %v955
        %v957 = vmul.f32 %v952, %v956
        %v958 = vlaneseq
        %v959 = vshrl.u32 %v958, 7
        %v960 = vsub.s32 0, %v959
        %v961 = vrot.slane %v669, %v960
        %v962 = vadd.f32 %v957, %v961
        %v963 = vpack.c.bf16 %v962, %v962
        %v964 = vld [vmem:[#allocation15] sm:$0xf]
        %v965 = vld [vmem:[#allocation15 + $0x4] sm:$0xf]
        %v966 = vld [vmem:[#allocation15 + $0x8] sm:$0xf]
        %v967 = vld [vmem:[#allocation15 + $0xc] sm:$0xf]
        %v968 = vld [vmem:[#allocation17] sm:$0x1]
        %v970 = vlaneseq
        %v971 = vshrl.u32 %v970, 7
        %v972 = vsub.s32 0, %v971
        %v973 = vrot.slane %v968, %v972
        %v978 = vunpack.c.l.b16 %v964
        %v979 = vunpack.c.l.b16 %v965
        %v980 = vunpack.c.l.b16 %v966
        %v981 = vunpack.c.l.b16 %v967
        %v982 = vpack.c.b16 %v979, %v978
        %v983 = vpack.c.b16 %v981, %v980
        %986 = vrot.lane.b32.xlu0 %v973, 96
        %v987 = vpop.permute.xlu0 %986
        %v990 = vsel %vm938, %v963, 0
        %992 = vmatprep.subr.bf16.mxu0 0
        %993 = vmatpush1.bf16.msra.mxu0 %v982
        %994 = vmatprep.subr.bf16.mxu0 0
        %995 = vmatpush1.bf16.msra.mxu0 %v983
        %996 = vmatprep.subr.bf16.mxu0 0
        %997 = vmatpush1.bf16.msra.mxu0 0
        %998 = vmatprep.subr.bf16.mxu0 0
        %999 = vmatpush1.bf16.msra.mxu0 0
        %1000 = vmatprep.subr.bf16.mxu0 0
        %1001 = vmatpush1.bf16.msra.mxu0 0
        %1002 = vmatprep.subr.bf16.mxu0 0
        %1003 = vmatpush1.bf16.msra.mxu0 0
        %1004 = vmatprep.subr.bf16.mxu0 0
        %1005 = vmatpush1.bf16.msra.mxu0 0
        %1006 = vmatprep.subr.bf16.mxu0 0
        %1007 = vmatpush1.bf16.msra.mxu0 0
        %1008 = vmatprep.subr.bf16.mxu0 0
        %1009 = vmatpush1.bf16.msra.mxu0 0
        %1010 = vmatprep.subr.bf16.mxu0 0
        %1011 = vmatpush1.bf16.msra.mxu0 0
        %1012 = vmatprep.subr.bf16.mxu0 0
        %1013 = vmatpush1.bf16.msra.mxu0 0
        %1014 = vmatprep.subr.bf16.mxu0 0
        %1015 = vmatpush1.bf16.msra.mxu0 0
        %1016 = vmatprep.subr.bf16.mxu0 0
        %1017 = vmatpush1.bf16.msra.mxu0 0
        %1018 = vmatprep.subr.bf16.mxu0 0
        %1019 = vmatpush1.bf16.msra.mxu0 0
        %1020 = vmatprep.subr.bf16.mxu0 0
        %1021 = vmatpush1.bf16.msra.mxu0 0
        %1022 = vmatprep.subr.bf16.mxu0 0
        %1023 = vmatpush1.bf16.msra.mxu0 0
        %1024 = vmatprep.mubr.bf16.mxu0 0
        %1025 = vmatmul.mubr.bf16.gmra.mrb[0].mxu0 %v990
        %v1026 = vpop.f32.mrb[0].mxu0
        %v1027 = vadd.f32 %v987, %v1026
        %v1028 = vpop.f32.mrb[0].mxu0
        %v1029 = vpop.f32.mrb[0].mxu0
        %v1030 = vpop.f32.mrb[0].mxu0
        %1031 = vdwg.mxu0
        %1033 = vrot.lane.b32.xlu0 %v1027, 120
        %v1034 = vpop.permute.xlu0 %1033
        %1036 = vrot.lane.b32.xlu0 %v1027, 112
        %v1037 = vpop.permute.xlu0 %1036
        %1039 = vrot.lane.b32.xlu0 %v1027, 104
        %v1040 = vpop.permute.xlu0 %1039
        %v1042 = vcombine.low %v1027, %v1037
        %v1043 = vcombine.high %v1027, %v1037
        %v1045 = vunpack.c.l.s4 1983009808
        %v1046 = vunpack.c.0.s8 %v1045
        %v1047 = vlaneseq
        %v1048 = vshrl.u32 %v1047, 7
        %v1049 = vsub.s32 %v1046, %v1048
        %v1050 = vrot.slane %v1042, %v1049
        %v1052 = vunpack.c.l.s4 1983009808
        %v1053 = vunpack.c.0.s8 %v1052
        %v1054 = vlaneseq
        %v1055 = vshrl.u32 %v1054, 7
        %v1056 = vsub.s32 %v1053, %v1055
        %v1057 = vrot.slane %v1043, %v1056
        %v1058 = vcombine.low %v1034, %v1040
        %v1059 = vcombine.high %v1034, %v1040
        %v1061 = vunpack.c.l.s4 1983009808
        %v1062 = vunpack.c.0.s8 %v1061
        %v1063 = vlaneseq
        %v1064 = vshrl.u32 %v1063, 7
        %v1065 = vsub.s32 %v1062, %v1064
        %v1066 = vrot.slane %v1058, %v1065
        %v1068 = vunpack.c.l.s4 1983009808
        %v1069 = vunpack.c.0.s8 %v1068
        %v1070 = vlaneseq
        %v1071 = vshrl.u32 %v1070, 7
        %v1072 = vsub.s32 %v1069, %v1071
        %v1073 = vrot.slane %v1059, %v1072
        %v1074 = vcombine.low %v1050, %v1066
        %v1075 = vcombine.high %v1050, %v1066
        %v1077 = vunpack.c.l.s4 1934713408
        %v1078 = vunpack.c.0.s8 %v1077
        %v1079 = vlaneseq
        %v1080 = vshrl.u32 %v1079, 7
        %v1081 = vsub.s32 %v1078, %v1080
        %v1082 = vrot.slane %v1074, %v1081
        %v1084 = vunpack.c.l.s4 1934713408
        %v1085 = vunpack.c.0.s8 %v1084
        %v1086 = vlaneseq
        %v1087 = vshrl.u32 %v1086, 7
        %v1088 = vsub.s32 %v1085, %v1087
        %v1089 = vrot.slane %v1075, %v1088
        %v1090 = vcombine.low %v1057, %v1073
        %v1091 = vcombine.high %v1057, %v1073
        %v1093 = vunpack.c.l.s4 1934713408
        %v1094 = vunpack.c.0.s8 %v1093
        %v1095 = vlaneseq
        %v1096 = vshrl.u32 %v1095, 7
        %v1097 = vsub.s32 %v1094, %v1096
        %v1098 = vrot.slane %v1090, %v1097
        %v1100 = vunpack.c.l.s4 1934713408
        %v1101 = vunpack.c.0.s8 %v1100
        %v1102 = vlaneseq
        %v1103 = vshrl.u32 %v1102, 7
        %v1104 = vsub.s32 %v1101, %v1103
        %v1105 = vrot.slane %v1091, %v1104
        %v1106 = vcombine.high %v1082, 0.0
        %v1107 = vcombine.high %v1089, 0.0
        %v1108 = vcombine.high %v1098, 0.0
        %v1109 = vcombine.high %v1105, 0.0
        %v1110 = vcombine.low %v1082, %v1089
        %v1112 = vunpack.c.l.s4 1983009808
        %v1113 = vunpack.c.0.s8 %v1112
        %v1114 = vlaneseq
        %v1115 = vshrl.u32 %v1114, 7
        %v1116 = vsub.s32 %v1113, %v1115
        %v1117 = vrot.slane %v1110, %v1116
        %v1118 = vcombine.low %v1106, %v1107
        %v1120 = vunpack.c.l.s4 1983009808
        %v1121 = vunpack.c.0.s8 %v1120
        %v1122 = vlaneseq
        %v1123 = vshrl.u32 %v1122, 7
        %v1124 = vsub.s32 %v1121, %v1123
        %v1125 = vrot.slane %v1118, %v1124
        %v1126 = vcombine.low %v1098, %v1105
        %v1128 = vunpack.c.l.s4 1983009808
        %v1129 = vunpack.c.0.s8 %v1128
        %v1130 = vlaneseq
        %v1131 = vshrl.u32 %v1130, 7
        %v1132 = vsub.s32 %v1129, %v1131
        %v1133 = vrot.slane %v1126, %v1132
        %v1134 = vcombine.low %v1108, %v1109
        %v1136 = vunpack.c.l.s4 1983009808
        %v1137 = vunpack.c.0.s8 %v1136
        %v1138 = vlaneseq
        %v1139 = vshrl.u32 %v1138, 7
        %v1140 = vsub.s32 %v1137, %v1139
        %v1141 = vrot.slane %v1134, %v1140
        %v1142 = vcombine.low %v1117, %v1125
        %v1143 = vcombine.high %v1117, %v1125
        %v1145 = vunpack.c.l.s4 1934713408
        %v1146 = vunpack.c.0.s8 %v1145
        %v1147 = vlaneseq
        %v1148 = vshrl.u32 %v1147, 7
        %v1149 = vsub.s32 %v1146, %v1148
        %v1150 = vrot.slane %v1142, %v1149
        %v1152 = vunpack.c.l.s4 1934713408
        %v1153 = vunpack.c.0.s8 %v1152
        %v1154 = vlaneseq
        %v1155 = vshrl.u32 %v1154, 7
        %v1156 = vsub.s32 %v1153, %v1155
        %v1157 = vrot.slane %v1143, %v1156
        %v1158 = vcombine.low %v1133, %v1141
        %v1159 = vcombine.high %v1133, %v1141
        %v1161 = vunpack.c.l.s4 1934713408
        %v1162 = vunpack.c.0.s8 %v1161
        %v1163 = vlaneseq
        %v1164 = vshrl.u32 %v1163, 7
        %v1165 = vsub.s32 %v1162, %v1164
        %v1166 = vrot.slane %v1158, %v1165
        %v1168 = vunpack.c.l.s4 1934713408
        %v1169 = vunpack.c.0.s8 %v1168
        %v1170 = vlaneseq
        %v1171 = vshrl.u32 %v1170, 7
        %v1172 = vsub.s32 %v1169, %v1171
        %v1173 = vrot.slane %v1159, %v1172
        %v1174 = vcombine.low %v1150, %v1166
        %v1175 = vcombine.high %v1150, %v1166
        %v1176 = vcombine.low %v1157, %v1173
        %v1177 = vcombine.high %v1157, %v1173
        %v1178 = vpack.c.bf16 %v1174, %v1174
        %v1179 = vpack.c.bf16 %v1175, %v1175
        %v1180 = vpack.c.bf16 %v1176, %v1176
        %v1181 = vpack.c.bf16 %v1177, %v1177
        %1182 = vrot.lane.b32.xlu0 %v1027, 96
        %v1183 = vpop.permute.xlu0 %1182
        %1184 = vrot.lane.b32.xlu0 %v1034, 96
        %v1185 = vpop.permute.xlu0 %1184
        %1186 = vrot.lane.b32.xlu0 %v1037, 96
        %v1187 = vpop.permute.xlu0 %1186
        %1188 = vrot.lane.b32.xlu0 %v1040, 96
        %v1189 = vpop.permute.xlu0 %1188
        %v1194 = vcombine.low %v1183, %v1187
        %v1195 = vcombine.high %v1183, %v1187
        %v1197 = vunpack.c.l.s4 1983009808
        %v1198 = vunpack.c.0.s8 %v1197
        %v1199 = vlaneseq
        %v1200 = vshrl.u32 %v1199, 7
        %v1201 = vsub.s32 %v1198, %v1200
        %v1202 = vrot.slane %v1194, %v1201
        %v1204 = vunpack.c.l.s4 1983009808
        %v1205 = vunpack.c.0.s8 %v1204
        %v1206 = vlaneseq
        %v1207 = vshrl.u32 %v1206, 7
        %v1208 = vsub.s32 %v1205, %v1207
        %v1209 = vrot.slane %v1195, %v1208
        %v1210 = vcombine.low %v1185, %v1189
        %v1211 = vcombine.high %v1185, %v1189
        %v1213 = vunpack.c.l.s4 1983009808
        %v1214 = vunpack.c.0.s8 %v1213
        %v1215 = vlaneseq
        %v1216 = vshrl.u32 %v1215, 7
        %v1217 = vsub.s32 %v1214, %v1216
        %v1218 = vrot.slane %v1210, %v1217
        %v1220 = vunpack.c.l.s4 1983009808
        %v1221 = vunpack.c.0.s8 %v1220
        %v1222 = vlaneseq
        %v1223 = vshrl.u32 %v1222, 7
        %v1224 = vsub.s32 %v1221, %v1223
        %v1225 = vrot.slane %v1211, %v1224
        %v1226 = vcombine.low %v1202, %v1218
        %v1227 = vcombine.high %v1202, %v1218
        %v1229 = vunpack.c.l.s4 1934713408
        %v1230 = vunpack.c.0.s8 %v1229
        %v1231 = vlaneseq
        %v1232 = vshrl.u32 %v1231, 7
        %v1233 = vsub.s32 %v1230, %v1232
        %v1234 = vrot.slane %v1226, %v1233
        %v1236 = vunpack.c.l.s4 1934713408
        %v1237 = vunpack.c.0.s8 %v1236
        %v1238 = vlaneseq
        %v1239 = vshrl.u32 %v1238, 7
        %v1240 = vsub.s32 %v1237, %v1239
        %v1241 = vrot.slane %v1227, %v1240
        %v1242 = vcombine.low %v1209, %v1225
        %v1243 = vcombine.high %v1209, %v1225
        %v1245 = vunpack.c.l.s4 1934713408
        %v1246 = vunpack.c.0.s8 %v1245
        %v1247 = vlaneseq
        %v1248 = vshrl.u32 %v1247, 7
        %v1249 = vsub.s32 %v1246, %v1248
        %v1250 = vrot.slane %v1242, %v1249
        %v1252 = vunpack.c.l.s4 1934713408
        %v1253 = vunpack.c.0.s8 %v1252
        %v1254 = vlaneseq
        %v1255 = vshrl.u32 %v1254, 7
        %v1256 = vsub.s32 %v1253, %v1255
        %v1257 = vrot.slane %v1243, %v1256
        %v1258 = vcombine.high %v1234, 0.0
        %v1259 = vcombine.high %v1241, 0.0
        %v1260 = vcombine.high %v1250, 0.0
        %v1261 = vcombine.high %v1257, 0.0
        %v1262 = vcombine.low %v1234, %v1241
        %v1264 = vunpack.c.l.s4 1983009808
        %v1265 = vunpack.c.0.s8 %v1264
        %v1266 = vlaneseq
        %v1267 = vshrl.u32 %v1266, 7
        %v1268 = vsub.s32 %v1265, %v1267
        %v1269 = vrot.slane %v1262, %v1268
        %v1270 = vcombine.low %v1258, %v1259
        %v1272 = vunpack.c.l.s4 1983009808
        %v1273 = vunpack.c.0.s8 %v1272
        %v1274 = vlaneseq
        %v1275 = vshrl.u32 %v1274, 7
        %v1276 = vsub.s32 %v1273, %v1275
        %v1277 = vrot.slane %v1270, %v1276
        %v1278 = vcombine.low %v1250, %v1257
        %v1280 = vunpack.c.l.s4 1983009808
        %v1281 = vunpack.c.0.s8 %v1280
        %v1282 = vlaneseq
        %v1283 = vshrl.u32 %v1282, 7
        %v1284 = vsub.s32 %v1281, %v1283
        %v1285 = vrot.slane %v1278, %v1284
        %v1286 = vcombine.low %v1260, %v1261
        %v1288 = vunpack.c.l.s4 1983009808
        %v1289 = vunpack.c.0.s8 %v1288
        %v1290 = vlaneseq
        %v1291 = vshrl.u32 %v1290, 7
        %v1292 = vsub.s32 %v1289, %v1291
        %v1293 = vrot.slane %v1286, %v1292
        %v1294 = vcombine.low %v1269, %v1277
        %v1295 = vcombine.high %v1269, %v1277
        %v1297 = vunpack.c.l.s4 1934713408
        %v1298 = vunpack.c.0.s8 %v1297
        %v1299 = vlaneseq
        %v1300 = vshrl.u32 %v1299, 7
        %v1301 = vsub.s32 %v1298, %v1300
        %v1302 = vrot.slane %v1294, %v1301
        %v1304 = vunpack.c.l.s4 1934713408
        %v1305 = vunpack.c.0.s8 %v1304
        %v1306 = vlaneseq
        %v1307 = vshrl.u32 %v1306, 7
        %v1308 = vsub.s32 %v1305, %v1307
        %v1309 = vrot.slane %v1295, %v1308
        %v1310 = vcombine.low %v1285, %v1293
        %v1311 = vcombine.high %v1285, %v1293
        %v1313 = vunpack.c.l.s4 1934713408
        %v1314 = vunpack.c.0.s8 %v1313
        %v1315 = vlaneseq
        %v1316 = vshrl.u32 %v1315, 7
        %v1317 = vsub.s32 %v1314, %v1316
        %v1318 = vrot.slane %v1310, %v1317
        %v1320 = vunpack.c.l.s4 1934713408
        %v1321 = vunpack.c.0.s8 %v1320
        %v1322 = vlaneseq
        %v1323 = vshrl.u32 %v1322, 7
        %v1324 = vsub.s32 %v1321, %v1323
        %v1325 = vrot.slane %v1311, %v1324
        %v1326 = vcombine.low %v1302, %v1318
        %v1327 = vcombine.high %v1302, %v1318
        %v1328 = vcombine.low %v1309, %v1325
        %v1329 = vcombine.high %v1309, %v1325
        %v1330 = vpack.c.bf16 %v1326, %v1326
        %v1331 = vpack.c.bf16 %v1327, %v1327
        %v1332 = vpack.c.bf16 %v1328, %v1328
        %v1333 = vpack.c.bf16 %v1329, %v1329
        %v1334 = vld [vmem:[#allocation2] sm:$0xf]
        %v1335 = vld [vmem:[#allocation2 + $0x4] sm:$0xf]
        %v1336 = vld [vmem:[#allocation2 + $0x8] sm:$0xf]
        %v1337 = vld [vmem:[#allocation2 + $0xc] sm:$0xf]
        %vm1338 = vcmask 64512
        %v1340 = vsel %vm1338, %v1334, 0
        %v1343 = vsel %vm1338, %v1178, 0
        %1345 = vmatprep.subr.bf16.mxu0 0
        %1346 = vmatpush1.bf16.xpose.msra.mxu0 %v1343
        %1347 = vmatprep.subr.bf16.mxu0 0
        %1348 = vmatpush1.bf16.xpose.msra.mxu0 0
        %1349 = vmatprep.subr.bf16.mxu0 0
        %1350 = vmatpush1.bf16.xpose.msra.mxu0 0
        %1351 = vmatprep.subr.bf16.mxu0 0
        %1352 = vmatpush1.bf16.xpose.msra.mxu0 0
        %1353 = vmatprep.subr.bf16.mxu0 0
        %1354 = vmatpush1.bf16.xpose.msra.mxu0 0
        %1355 = vmatprep.subr.bf16.mxu0 0
        %1356 = vmatpush1.bf16.xpose.msra.mxu0 0
        %1357 = vmatprep.subr.bf16.mxu0 0
        %1358 = vmatpush1.bf16.xpose.msra.mxu0 0
        %1359 = vmatprep.subr.bf16.mxu0 0
        %1360 = vmatpush1.bf16.xpose.msra.mxu0 0
        %1361 = vmatprep.subr.bf16.mxu0 0
        %1362 = vmatpush1.bf16.xpose.msra.mxu0 0
        %1363 = vmatprep.subr.bf16.mxu0 0
        %1364 = vmatpush1.bf16.xpose.msra.mxu0 0
        %1365 = vmatprep.subr.bf16.mxu0 0
        %1366 = vmatpush1.bf16.xpose.msra.mxu0 0
        %1367 = vmatprep.subr.bf16.mxu0 0
        %1368 = vmatpush1.bf16.xpose.msra.mxu0 0
        %1369 = vmatprep.subr.bf16.mxu0 0
        %1370 = vmatpush1.bf16.xpose.msra.mxu0 0
        %1371 = vmatprep.subr.bf16.mxu0 0
        %1372 = vmatpush1.bf16.xpose.msra.mxu0 0
        %1373 = vmatprep.subr.bf16.mxu0 0
        %1374 = vmatpush1.bf16.xpose.msra.mxu0 0
        %1375 = vmatprep.subr.bf16.mxu0 0
        %1376 = vmatpush1.bf16.xpose.msra.mxu0 0
        %1377 = vmatprep.mubr.bf16.mxu0 0
        %1378 = vmatmul.mubr.bf16.gmra.mrb[0].mxu0 %v1340
        %v1379 = vpop.f32.mrb[0].mxu0
        %v1380 = vadd.f32 0.0, %v1379
        %v1381 = vpop.f32.mrb[0].mxu0
        %v1382 = vpop.f32.mrb[0].mxu0
        %v1383 = vpop.f32.mrb[0].mxu0
        %1384 = vdwg.mxu0
        %v1386 = vsel %vm1338, %v1335, 0
        %v1389 = vsel %vm1338, %v1179, 0
        %1391 = vmatprep.subr.bf16.mxu0 0
        %1392 = vmatpush1.bf16.xpose.msra.mxu0 %v1389
        %1393 = vmatprep.subr.bf16.mxu0 0
        %1394 = vmatpush1.bf16.xpose.msra.mxu0 0
        %1395 = vmatprep.subr.bf16.mxu0 0
        %1396 = vmatpush1.bf16.xpose.msra.mxu0 0
        %1397 = vmatprep.subr.bf16.mxu0 0
        %1398 = vmatpush1.bf16.xpose.msra.mxu0 0
        %1399 = vmatprep.subr.bf16.mxu0 0
        %1400 = vmatpush1.bf16.xpose.msra.mxu0 0
        %1401 = vmatprep.subr.bf16.mxu0 0
        %1402 = vmatpush1.bf16.xpose.msra.mxu0 0
        %1403 = vmatprep.subr.bf16.mxu0 0
        %1404 = vmatpush1.bf16.xpose.msra.mxu0 0
        %1405 = vmatprep.subr.bf16.mxu0 0
        %1406 = vmatpush1.bf16.xpose.msra.mxu0 0
        %1407 = vmatprep.subr.bf16.mxu0 0
        %1408 = vmatpush1.bf16.xpose.msra.mxu0 0
        %1409 = vmatprep.subr.bf16.mxu0 0
        %1410 = vmatpush1.bf16.xpose.msra.mxu0 0
        %1411 = vmatprep.subr.bf16.mxu0 0
        %1412 = vmatpush1.bf16.xpose.msra.mxu0 0
        %1413 = vmatprep.subr.bf16.mxu0 0
        %1414 = vmatpush1.bf16.xpose.msra.mxu0 0
        %1415 = vmatprep.subr.bf16.mxu0 0
        %1416 = vmatpush1.bf16.xpose.msra.mxu0 0
        %1417 = vmatprep.subr.bf16.mxu0 0
        %1418 = vmatpush1.bf16.xpose.msra.mxu0 0
        %1419 = vmatprep.subr.bf16.mxu0 0
        %1420 = vmatpush1.bf16.xpose.msra.mxu0 0
        %1421 = vmatprep.subr.bf16.mxu0 0
        %1422 = vmatpush1.bf16.xpose.msra.mxu0 0
        %1423 = vmatprep.mubr.bf16.mxu0 0
        %1424 = vmatmul.mubr.bf16.gmra.mrb[0].mxu0 %v1386
        %v1425 = vpop.f32.mrb[0].mxu0
        %v1426 = vadd.f32 0.0, %v1425
        %v1427 = vpop.f32.mrb[0].mxu0
        %v1428 = vpop.f32.mrb[0].mxu0
        %v1429 = vpop.f32.mrb[0].mxu0
        %1430 = vdwg.mxu0
        %v1432 = vsel %vm1338, %v1336, 0
        %v1435 = vsel %vm1338, %v1180, 0
        %1437 = vmatprep.subr.bf16.mxu0 0
        %1438 = vmatpush1.bf16.xpose.msra.mxu0 %v1435
        %1439 = vmatprep.subr.bf16.mxu0 0
        %1440 = vmatpush1.bf16.xpose.msra.mxu0 0
        %1441 = vmatprep.subr.bf16.mxu0 0
        %1442 = vmatpush1.bf16.xpose.msra.mxu0 0
        %1443 = vmatprep.subr.bf16.mxu0 0
        %1444 = vmatpush1.bf16.xpose.msra.mxu0 0
        %1445 = vmatprep.subr.bf16.mxu0 0
        %1446 = vmatpush1.bf16.xpose.msra.mxu0 0
        %1447 = vmatprep.subr.bf16.mxu0 0
        %1448 = vmatpush1.bf16.xpose.msra.mxu0 0
        %1449 = vmatprep.subr.bf16.mxu0 0
        %1450 = vmatpush1.bf16.xpose.msra.mxu0 0
        %1451 = vmatprep.subr.bf16.mxu0 0
        %1452 = vmatpush1.bf16.xpose.msra.mxu0 0
        %1453 = vmatprep.subr.bf16.mxu0 0
        %1454 = vmatpush1.bf16.xpose.msra.mxu0 0
        %1455 = vmatprep.subr.bf16.mxu0 0
        %1456 = vmatpush1.bf16.xpose.msra.mxu0 0
        %1457 = vmatprep.subr.bf16.mxu0 0
        %1458 = vmatpush1.bf16.xpose.msra.mxu0 0
        %1459 = vmatprep.subr.bf16.mxu0 0
        %1460 = vmatpush1.bf16.xpose.msra.mxu0 0
        %1461 = vmatprep.subr.bf16.mxu0 0
        %1462 = vmatpush1.bf16.xpose.msra.mxu0 0
        %1463 = vmatprep.subr.bf16.mxu0 0
        %1464 = vmatpush1.bf16.xpose.msra.mxu0 0
        %1465 = vmatprep.subr.bf16.mxu0 0
        %1466 = vmatpush1.bf16.xpose.msra.mxu0 0
        %1467 = vmatprep.subr.bf16.mxu0 0
        %1468 = vmatpush1.bf16.xpose.msra.mxu0 0
        %1469 = vmatprep.mubr.bf16.mxu0 0
        %1470 = vmatmul.mubr.bf16.gmra.mrb[0].mxu0 %v1432
        %v1471 = vpop.f32.mrb[0].mxu0
        %v1472 = vadd.f32 0.0, %v1471
        %v1473 = vpop.f32.mrb[0].mxu0
        %v1474 = vpop.f32.mrb[0].mxu0
        %v1475 = vpop.f32.mrb[0].mxu0
        %1476 = vdwg.mxu0
        %v1478 = vsel %vm1338, %v1337, 0
        %v1481 = vsel %vm1338, %v1181, 0
        %1483 = vmatprep.subr.bf16.mxu0 0
        %1484 = vmatpush1.bf16.xpose.msra.mxu0 %v1481
        %1485 = vmatprep.subr.bf16.mxu0 0
        %1486 = vmatpush1.bf16.xpose.msra.mxu0 0
        %1487 = vmatprep.subr.bf16.mxu0 0
        %1488 = vmatpush1.bf16.xpose.msra.mxu0 0
        %1489 = vmatprep.subr.bf16.mxu0 0
        %1490 = vmatpush1.bf16.xpose.msra.mxu0 0
        %1491 = vmatprep.subr.bf16.mxu0 0
        %1492 = vmatpush1.bf16.xpose.msra.mxu0 0
        %1493 = vmatprep.subr.bf16.mxu0 0
        %1494 = vmatpush1.bf16.xpose.msra.mxu0 0
        %1495 = vmatprep.subr.bf16.mxu0 0
        %1496 = vmatpush1.bf16.xpose.msra.mxu0 0
        %1497 = vmatprep.subr.bf16.mxu0 0
        %1498 = vmatpush1.bf16.xpose.msra.mxu0 0
        %1499 = vmatprep.subr.bf16.mxu0 0
        %1500 = vmatpush1.bf16.xpose.msra.mxu0 0
        %1501 = vmatprep.subr.bf16.mxu0 0
        %1502 = vmatpush1.bf16.xpose.msra.mxu0 0
        %1503 = vmatprep.subr.bf16.mxu0 0
        %1504 = vmatpush1.bf16.xpose.msra.mxu0 0
        %1505 = vmatprep.subr.bf16.mxu0 0
        %1506 = vmatpush1.bf16.xpose.msra.mxu0 0
        %1507 = vmatprep.subr.bf16.mxu0 0
        %1508 = vmatpush1.bf16.xpose.msra.mxu0 0
        %1509 = vmatprep.subr.bf16.mxu0 0
        %1510 = vmatpush1.bf16.xpose.msra.mxu0 0
        %1511 = vmatprep.subr.bf16.mxu0 0
        %1512 = vmatpush1.bf16.xpose.msra.mxu0 0
        %1513 = vmatprep.subr.bf16.mxu0 0
        %1514 = vmatpush1.bf16.xpose.msra.mxu0 0
        %1515 = vmatprep.mubr.bf16.mxu0 0
        %1516 = vmatmul.mubr.bf16.gmra.mrb[0].mxu0 %v1478
        %v1517 = vpop.f32.mrb[0].mxu0
        %v1518 = vadd.f32 0.0, %v1517
        %v1519 = vpop.f32.mrb[0].mxu0
        %v1520 = vpop.f32.mrb[0].mxu0
        %v1521 = vpop.f32.mrb[0].mxu0
        %1522 = vdwg.mxu0
        %v1523 = vld [vmem:[#allocation3] sm:$0xff]
        %v1524 = vld [vmem:[#allocation3 + $0x8] sm:$0xff]
        %v1525 = vld [vmem:[#allocation3 + $0x10] sm:$0xff]
        %v1526 = vld [vmem:[#allocation3 + $0x18] sm:$0xff]
        %v1527 = vsel %vm1338, %v1380, -inf
        %1528 = vmax.xlane.f32.xlu0 %v1527
        %v1529 = vpop.xlane.xlu0 %1528
        %v1530 = vsel %vm1338, %v1426, -inf
        %1531 = vmax.xlane.f32.xlu0 %v1530
        %v1532 = vpop.xlane.xlu0 %1531
        %v1533 = vsel %vm1338, %v1472, -inf
        %1534 = vmax.xlane.f32.xlu0 %v1533
        %v1535 = vpop.xlane.xlu0 %1534
        %v1536 = vsel %vm1338, %v1518, -inf
        %1537 = vmax.xlane.f32.xlu0 %v1536
        %v1538 = vpop.xlane.xlu0 %1537
        %v1539 = vmax.f32 %v1523, %v1529
        %v1540 = vmax.f32 %v1524, %v1532
        %v1541 = vmax.f32 %v1525, %v1535
        %v1542 = vmax.f32 %v1526, %v1538
        %v1543 = vsub.f32 %v1523, %v1539
        %v1544 = vsub.f32 %v1524, %v1540
        %v1545 = vsub.f32 %v1525, %v1541
        %v1546 = vsub.f32 %v1526, %v1542
        %v1547 = vmul.f32 %v1543, 1.442695
        %v1548 = vpow.pop %v1547
        %v1549 = vmul.f32 %v1544, 1.442695
        %v1550 = vpow.pop %v1549
        %v1551 = vmul.f32 %v1545, 1.442695
        %v1552 = vpow.pop %v1551
        %v1553 = vmul.f32 %v1546, 1.442695
        %v1554 = vpow.pop %v1553
        %1556 = vset.pattern.permute.xlu0 0
        %1557 = vperm.xlu0 %1556, %v1539
        %v1558 = vpop.permute.xlu0 %1557
        %1561 = vset.pattern.permute.xlu0 0
        %1562 = vperm.xlu0 %1561, %v1540
        %v1563 = vpop.permute.xlu0 %1562
        %1566 = vset.pattern.permute.xlu0 0
        %1567 = vperm.xlu0 %1566, %v1541
        %v1568 = vpop.permute.xlu0 %1567
        %1571 = vset.pattern.permute.xlu0 0
        %1572 = vperm.xlu0 %1571, %v1542
        %v1573 = vpop.permute.xlu0 %1572
        %v1575 = vsub.f32 %v1380, %v1558
        %v1576 = vsub.f32 %v1426, %v1563
        %v1577 = vsub.f32 %v1472, %v1568
        %v1578 = vsub.f32 %v1518, %v1573
        %v1579 = vmul.f32 %v1575, 1.442695
        %v1580 = vpow.pop %v1579
        %v1581 = vmul.f32 %v1576, 1.442695
        %v1582 = vpow.pop %v1581
        %v1583 = vmul.f32 %v1577, 1.442695
        %v1584 = vpow.pop %v1583
        %v1585 = vmul.f32 %v1578, 1.442695
        %v1586 = vpow.pop %v1585
        %v1587 = vld [vmem:[#allocation4] sm:$0xff]
        %v1588 = vld [vmem:[#allocation4 + $0x8] sm:$0xff]
        %v1589 = vld [vmem:[#allocation4 + $0x10] sm:$0xff]
        %v1590 = vld [vmem:[#allocation4 + $0x18] sm:$0xff]
        %v1591 = vmul.f32 %v1548, %v1587
        %v1592 = vmul.f32 %v1550, %v1588
        %v1593 = vmul.f32 %v1552, %v1589
        %v1594 = vmul.f32 %v1554, %v1590
        %v1595 = vsel %vm1338, %v1580, 0.0
        %1596 = vadd.xlane.f32.xlu0 %v1595
        %v1597 = vpop.xlane.xlu0 %1596
        %v1598 = vsel %vm1338, %v1582, 0.0
        %1599 = vadd.xlane.f32.xlu0 %v1598
        %v1600 = vpop.xlane.xlu0 %1599
        %v1601 = vsel %vm1338, %v1584, 0.0
        %1602 = vadd.xlane.f32.xlu0 %v1601
        %v1603 = vpop.xlane.xlu0 %1602
        %v1604 = vsel %vm1338, %v1586, 0.0
        %1605 = vadd.xlane.f32.xlu0 %v1604
        %v1606 = vpop.xlane.xlu0 %1605
        %v1607 = vadd.f32 %v1591, %v1597
        %v1608 = vadd.f32 %v1592, %v1600
        %v1609 = vadd.f32 %v1593, %v1603
        %v1610 = vadd.f32 %v1594, %v1606
        %vm1611 = vcmask 7168
        %1612 = vst.msk [vmem:[#allocation4] sm:$0xff] %vm1611, %v1607
        %1613 = vst.msk [vmem:[#allocation4 + $0x8] sm:$0xff] %vm1611, %v1608
        %1614 = vst.msk [vmem:[#allocation4 + $0x10] sm:$0xff] %vm1611, %v1609
        %1615 = vst.msk [vmem:[#allocation4 + $0x18] sm:$0xff] %vm1611, %v1610
        %v1616 = vld [vmem:[#allocation5] sm:$0xff]
        %v1617 = vld [vmem:[#allocation5 + $0x8] sm:$0xff]
        %v1618 = vld [vmem:[#allocation5 + $0x10] sm:$0xff]
        %v1619 = vld [vmem:[#allocation5 + $0x18] sm:$0xff]
        %1621 = vset.pattern.permute.xlu0 0
        %1622 = vperm.xlu0 %1621, %v1548
        %v1623 = vpop.permute.xlu0 %1622
        %1626 = vset.pattern.permute.xlu0 0
        %1627 = vperm.xlu0 %1626, %v1550
        %v1628 = vpop.permute.xlu0 %1627
        %1631 = vset.pattern.permute.xlu0 0
        %1632 = vperm.xlu0 %1631, %v1552
        %v1633 = vpop.permute.xlu0 %1632
        %1636 = vset.pattern.permute.xlu0 0
        %1637 = vperm.xlu0 %1636, %v1554
        %v1638 = vpop.permute.xlu0 %1637
        %v1640 = vmul.f32 %v1623, %v1616
        %v1641 = vmul.f32 %v1628, %v1617
        %v1642 = vmul.f32 %v1633, %v1618
        %v1643 = vmul.f32 %v1638, %v1619
        %v1644 = vpack.c.bf16 %v1580, %v1580
        %v1645 = vpack.c.bf16 %v1582, %v1582
        %v1646 = vpack.c.bf16 %v1584, %v1584
        %v1647 = vpack.c.bf16 %v1586, %v1586
        %v1649 = vsel %vm1338, %v1644, 0
        %vm1651 = vcmask 1043456
        %v1653 = vsel %vm1651, %v1330, 0
        %1655 = vmatprep.subr.bf16.mxu0 0
        %1656 = vmatpush1.bf16.msra.mxu0 %v1653
        %1657 = vmatprep.subr.bf16.mxu0 0
        %1658 = vmatpush1.bf16.msra.mxu0 0
        %1659 = vmatprep.subr.bf16.mxu0 0
        %1660 = vmatpush1.bf16.msra.mxu0 0
        %1661 = vmatprep.subr.bf16.mxu0 0
        %1662 = vmatpush1.bf16.msra.mxu0 0
        %1663 = vmatprep.subr.bf16.mxu0 0
        %1664 = vmatpush1.bf16.msra.mxu0 0
        %1665 = vmatprep.subr.bf16.mxu0 0
        %1666 = vmatpush1.bf16.msra.mxu0 0
        %1667 = vmatprep.subr.bf16.mxu0 0
        %1668 = vmatpush1.bf16.msra.mxu0 0
        %1669 = vmatprep.subr.bf16.mxu0 0
        %1670 = vmatpush1.bf16.msra.mxu0 0
        %1671 = vmatprep.subr.bf16.mxu0 0
        %1672 = vmatpush1.bf16.msra.mxu0 0
        %1673 = vmatprep.subr.bf16.mxu0 0
        %1674 = vmatpush1.bf16.msra.mxu0 0
        %1675 = vmatprep.subr.bf16.mxu0 0
        %1676 = vmatpush1.bf16.msra.mxu0 0
        %1677 = vmatprep.subr.bf16.mxu0 0
        %1678 = vmatpush1.bf16.msra.mxu0 0
        %1679 = vmatprep.subr.bf16.mxu0 0
        %1680 = vmatpush1.bf16.msra.mxu0 0
        %1681 = vmatprep.subr.bf16.mxu0 0
        %1682 = vmatpush1.bf16.msra.mxu0 0
        %1683 = vmatprep.subr.bf16.mxu0 0
        %1684 = vmatpush1.bf16.msra.mxu0 0
        %1685 = vmatprep.subr.bf16.mxu0 0
        %1686 = vmatpush1.bf16.msra.mxu0 0
        %1687 = vmatprep.mubr.bf16.mxu0 0
        %1688 = vmatmul.mubr.bf16.gmra.mrb[0].mxu0 %v1649
        %v1689 = vpop.f32.mrb[0].mxu0
        %v1690 = vadd.f32 0.0, %v1689
        %v1691 = vpop.f32.mrb[0].mxu0
        %v1692 = vpop.f32.mrb[0].mxu0
        %v1693 = vpop.f32.mrb[0].mxu0
        %1694 = vdwg.mxu0
        %v1696 = vsel %vm1338, %v1645, 0
        %v1699 = vsel %vm1651, %v1331, 0
        %1701 = vmatprep.subr.bf16.mxu0 0
        %1702 = vmatpush1.bf16.msra.mxu0 %v1699
        %1703 = vmatprep.subr.bf16.mxu0 0
        %1704 = vmatpush1.bf16.msra.mxu0 0
        %1705 = vmatprep.subr.bf16.mxu0 0
        %1706 = vmatpush1.bf16.msra.mxu0 0
        %1707 = vmatprep.subr.bf16.mxu0 0
        %1708 = vmatpush1.bf16.msra.mxu0 0
        %1709 = vmatprep.subr.bf16.mxu0 0
        %1710 = vmatpush1.bf16.msra.mxu0 0
        %1711 = vmatprep.subr.bf16.mxu0 0
        %1712 = vmatpush1.bf16.msra.mxu0 0
        %1713 = vmatprep.subr.bf16.mxu0 0
        %1714 = vmatpush1.bf16.msra.mxu0 0
        %1715 = vmatprep.subr.bf16.mxu0 0
        %1716 = vmatpush1.bf16.msra.mxu0 0
        %1717 = vmatprep.subr.bf16.mxu0 0
        %1718 = vmatpush1.bf16.msra.mxu0 0
        %1719 = vmatprep.subr.bf16.mxu0 0
        %1720 = vmatpush1.bf16.msra.mxu0 0
        %1721 = vmatprep.subr.bf16.mxu0 0
        %1722 = vmatpush1.bf16.msra.mxu0 0
        %1723 = vmatprep.subr.bf16.mxu0 0
        %1724 = vmatpush1.bf16.msra.mxu0 0
        %1725 = vmatprep.subr.bf16.mxu0 0
        %1726 = vmatpush1.bf16.msra.mxu0 0
        %1727 = vmatprep.subr.bf16.mxu0 0
        %1728 = vmatpush1.bf16.msra.mxu0 0
        %1729 = vmatprep.subr.bf16.mxu0 0
        %1730 = vmatpush1.bf16.msra.mxu0 0
        %1731 = vmatprep.subr.bf16.mxu0 0
        %1732 = vmatpush1.bf16.msra.mxu0 0
        %1733 = vmatprep.mubr.bf16.mxu0 0
        %1734 = vmatmul.mubr.bf16.gmra.mrb[0].mxu0 %v1696
        %v1735 = vpop.f32.mrb[0].mxu0
        %v1736 = vadd.f32 0.0, %v1735
        %v1737 = vpop.f32.mrb[0].mxu0
        %v1738 = vpop.f32.mrb[0].mxu0
        %v1739 = vpop.f32.mrb[0].mxu0
        %1740 = vdwg.mxu0
        %v1742 = vsel %vm1338, %v1646, 0
        %v1745 = vsel %vm1651, %v1332, 0
        %1747 = vmatprep.subr.bf16.mxu0 0
        %1748 = vmatpush1.bf16.msra.mxu0 %v1745
        %1749 = vmatprep.subr.bf16.mxu0 0
        %1750 = vmatpush1.bf16.msra.mxu0 0
        %1751 = vmatprep.subr.bf16.mxu0 0
        %1752 = vmatpush1.bf16.msra.mxu0 0
        %1753 = vmatprep.subr.bf16.mxu0 0
        %1754 = vmatpush1.bf16.msra.mxu0 0
        %1755 = vmatprep.subr.bf16.mxu0 0
        %1756 = vmatpush1.bf16.msra.mxu0 0
        %1757 = vmatprep.subr.bf16.mxu0 0
        %1758 = vmatpush1.bf16.msra.mxu0 0
        %1759 = vmatprep.subr.bf16.mxu0 0
        %1760 = vmatpush1.bf16.msra.mxu0 0
        %1761 = vmatprep.subr.bf16.mxu0 0
        %1762 = vmatpush1.bf16.msra.mxu0 0
        %1763 = vmatprep.subr.bf16.mxu0 0
        %1764 = vmatpush1.bf16.msra.mxu0 0
        %1765 = vmatprep.subr.bf16.mxu0 0
        %1766 = vmatpush1.bf16.msra.mxu0 0
        %1767 = vmatprep.subr.bf16.mxu0 0
        %1768 = vmatpush1.bf16.msra.mxu0 0
        %1769 = vmatprep.subr.bf16.mxu0 0
        %1770 = vmatpush1.bf16.msra.mxu0 0
        %1771 = vmatprep.subr.bf16.mxu0 0
        %1772 = vmatpush1.bf16.msra.mxu0 0
        %1773 = vmatprep.subr.bf16.mxu0 0
        %1774 = vmatpush1.bf16.msra.mxu0 0
        %1775 = vmatprep.subr.bf16.mxu0 0
        %1776 = vmatpush1.bf16.msra.mxu0 0
        %1777 = vmatprep.subr.bf16.mxu0 0
        %1778 = vmatpush1.bf16.msra.mxu0 0
        %1779 = vmatprep.mubr.bf16.mxu0 0
        %1780 = vmatmul.mubr.bf16.gmra.mrb[0].mxu0 %v1742
        %v1781 = vpop.f32.mrb[0].mxu0
        %v1782 = vadd.f32 0.0, %v1781
        %v1783 = vpop.f32.mrb[0].mxu0
        %v1784 = vpop.f32.mrb[0].mxu0
        %v1785 = vpop.f32.mrb[0].mxu0
        %1786 = vdwg.mxu0
        %v1788 = vsel %vm1338, %v1647, 0
        %v1791 = vsel %vm1651, %v1333, 0
        %1793 = vmatprep.subr.bf16.mxu0 0
        %1794 = vmatpush1.bf16.msra.mxu0 %v1791
        %1795 = vmatprep.subr.bf16.mxu0 0
        %1796 = vmatpush1.bf16.msra.mxu0 0
        %1797 = vmatprep.subr.bf16.mxu0 0
        %1798 = vmatpush1.bf16.msra.mxu0 0
        %1799 = vmatprep.subr.bf16.mxu0 0
        %1800 = vmatpush1.bf16.msra.mxu0 0
        %1801 = vmatprep.subr.bf16.mxu0 0
        %1802 = vmatpush1.bf16.msra.mxu0 0
        %1803 = vmatprep.subr.bf16.mxu0 0
        %1804 = vmatpush1.bf16.msra.mxu0 0
        %1805 = vmatprep.subr.bf16.mxu0 0
        %1806 = vmatpush1.bf16.msra.mxu0 0
        %1807 = vmatprep.subr.bf16.mxu0 0
        %1808 = vmatpush1.bf16.msra.mxu0 0
        %1809 = vmatprep.subr.bf16.mxu0 0
        %1810 = vmatpush1.bf16.msra.mxu0 0
        %1811 = vmatprep.subr.bf16.mxu0 0
        %1812 = vmatpush1.bf16.msra.mxu0 0
        %1813 = vmatprep.subr.bf16.mxu0 0
        %1814 = vmatpush1.bf16.msra.mxu0 0
        %1815 = vmatprep.subr.bf16.mxu0 0
        %1816 = vmatpush1.bf16.msra.mxu0 0
        %1817 = vmatprep.subr.bf16.mxu0 0
        %1818 = vmatpush1.bf16.msra.mxu0 0
        %1819 = vmatprep.subr.bf16.mxu0 0
        %1820 = vmatpush1.bf16.msra.mxu0 0
        %1821 = vmatprep.subr.bf16.mxu0 0
        %1822 = vmatpush1.bf16.msra.mxu0 0
        %1823 = vmatprep.subr.bf16.mxu0 0
        %1824 = vmatpush1.bf16.msra.mxu0 0
        %1825 = vmatprep.mubr.bf16.mxu0 0
        %1826 = vmatmul.mubr.bf16.gmra.mrb[0].mxu0 %v1788
        %v1827 = vpop.f32.mrb[0].mxu0
        %v1828 = vadd.f32 0.0, %v1827
        %v1829 = vpop.f32.mrb[0].mxu0
        %v1830 = vpop.f32.mrb[0].mxu0
        %v1831 = vpop.f32.mrb[0].mxu0
        %1832 = vdwg.mxu0
        %v1833 = vadd.f32 %v1640, %v1690
        %v1834 = vadd.f32 %v1641, %v1736
        %v1835 = vadd.f32 %v1642, %v1782
        %v1836 = vadd.f32 %v1643, %v1828
        %1837 = vst.msk [vmem:[#allocation5] sm:$0xff] %vm1338, %v1833
        %1838 = vst.msk [vmem:[#allocation5 + $0x8] sm:$0xff] %vm1338, %v1834
        %1839 = vst.msk [vmem:[#allocation5 + $0x10] sm:$0xff] %vm1338, %v1835
        %1840 = vst.msk [vmem:[#allocation5 + $0x18] sm:$0xff] %vm1338, %v1836
        %1841 = vst.msk [vmem:[#allocation3] sm:$0xff] %vm1611, %v1539
        %1842 = vst.msk [vmem:[#allocation3 + $0x8] sm:$0xff] %vm1611, %v1540
        %1843 = vst.msk [vmem:[#allocation3 + $0x10] sm:$0xff] %vm1611, %v1541
        %1844 = vst.msk [vmem:[#allocation3 + $0x18] sm:$0xff] %vm1611, %v1542
        // Predicated region
        $region129: #{tpu_custom_call.1} parent=71 // pred_check
          %p1845 = pneg %p670
        $region130: #{tpu_custom_call.1} parent=71 // pred_check_branch
          %1847 = sbr.rel (%p1845) target = $region132
        $region131: #{tpu_custom_call.1} parent=71 // pred_region
          %v1848 = vld [vmem:[#allocation5] sm:$0xff]
          %v1849 = vld [vmem:[#allocation5 + $0x8] sm:$0xff]
          %v1850 = vld [vmem:[#allocation5 + $0x10] sm:$0xff]
          %v1851 = vld [vmem:[#allocation5 + $0x18] sm:$0xff]
          %v1852 = vld [vmem:[#allocation4] sm:$0xff]
          %v1853 = vld [vmem:[#allocation4 + $0x8] sm:$0xff]
          %v1854 = vld [vmem:[#allocation4 + $0x10] sm:$0xff]
          %v1855 = vld [vmem:[#allocation4 + $0x18] sm:$0xff]
          %v1856 = vrcp.pop %v1852
          %v1857 = vrcp.pop %v1853
          %v1858 = vrcp.pop %v1854
          %v1859 = vrcp.pop %v1855
          %1861 = vset.pattern.permute.xlu0 0
          %1862 = vperm.xlu0 %1861, %v1856
          %v1863 = vpop.permute.xlu0 %1862
          %1866 = vset.pattern.permute.xlu0 0
          %1867 = vperm.xlu0 %1866, %v1857
          %v1868 = vpop.permute.xlu0 %1867
          %1871 = vset.pattern.permute.xlu0 0
          %1872 = vperm.xlu0 %1871, %v1858
          %v1873 = vpop.permute.xlu0 %1872
          %1876 = vset.pattern.permute.xlu0 0
          %1877 = vperm.xlu0 %1876, %v1859
          %v1878 = vpop.permute.xlu0 %1877
          %v1880 = vmul.f32 %v1848, %v1863
          %v1881 = vmul.f32 %v1849, %v1868
          %v1882 = vmul.f32 %v1850, %v1873
          %v1883 = vmul.f32 %v1851, %v1878
          %v1884 = vcombine.low %v1880, %v1882
          %v1885 = vcombine.high %v1880, %v1882
          %v1887 = vunpack.c.l.s4 1983009808
          %v1888 = vunpack.c.0.s8 %v1887
          %v1889 = vlaneseq
          %v1890 = vshrl.u32 %v1889, 7
          %v1891 = vsub.s32 %v1888, %v1890
          %v1892 = vrot.slane %v1884, %v1891
          %v1894 = vunpack.c.l.s4 1983009808
          %v1895 = vunpack.c.0.s8 %v1894
          %v1896 = vlaneseq
          %v1897 = vshrl.u32 %v1896, 7
          %v1898 = vsub.s32 %v1895, %v1897
          %v1899 = vrot.slane %v1885, %v1898
          %v1900 = vcombine.low %v1881, %v1883
          %v1901 = vcombine.high %v1881, %v1883
          %v1903 = vunpack.c.l.s4 1983009808
          %v1904 = vunpack.c.0.s8 %v1903
          %v1905 = vlaneseq
          %v1906 = vshrl.u32 %v1905, 7
          %v1907 = vsub.s32 %v1904, %v1906
          %v1908 = vrot.slane %v1900, %v1907
          %v1910 = vunpack.c.l.s4 1983009808
          %v1911 = vunpack.c.0.s8 %v1910
          %v1912 = vlaneseq
          %v1913 = vshrl.u32 %v1912, 7
          %v1914 = vsub.s32 %v1911, %v1913
          %v1915 = vrot.slane %v1901, %v1914
          %v1916 = vcombine.low %v1892, %v1908
          %v1917 = vcombine.high %v1892, %v1908
          %v1919 = vunpack.c.l.s4 1934713408
          %v1920 = vunpack.c.0.s8 %v1919
          %v1921 = vlaneseq
          %v1922 = vshrl.u32 %v1921, 7
          %v1923 = vsub.s32 %v1920, %v1922
          %v1924 = vrot.slane %v1916, %v1923
          %v1926 = vunpack.c.l.s4 1934713408
          %v1927 = vunpack.c.0.s8 %v1926
          %v1928 = vlaneseq
          %v1929 = vshrl.u32 %v1928, 7
          %v1930 = vsub.s32 %v1927, %v1929
          %v1931 = vrot.slane %v1917, %v1930
          %v1932 = vcombine.low %v1899, %v1915
          %v1933 = vcombine.high %v1899, %v1915
          %v1935 = vunpack.c.l.s4 1934713408
          %v1936 = vunpack.c.0.s8 %v1935
          %v1937 = vlaneseq
          %v1938 = vshrl.u32 %v1937, 7
          %v1939 = vsub.s32 %v1936, %v1938
          %v1940 = vrot.slane %v1932, %v1939
          %v1942 = vunpack.c.l.s4 1934713408
          %v1943 = vunpack.c.0.s8 %v1942
          %v1944 = vlaneseq
          %v1945 = vshrl.u32 %v1944, 7
          %v1946 = vsub.s32 %v1943, %v1945
          %v1947 = vrot.slane %v1933, %v1946
          %v1948 = vcombine.high %v1924, 0.0
          %v1949 = vcombine.high %v1931, 0.0
          %v1950 = vcombine.high %v1940, 0.0
          %v1951 = vcombine.high %v1947, 0.0
          %v1952 = vcombine.low %v1924, %v1931
          %v1954 = vunpack.c.l.s4 1983009808
          %v1955 = vunpack.c.0.s8 %v1954
          %v1956 = vlaneseq
          %v1957 = vshrl.u32 %v1956, 7
          %v1958 = vsub.s32 %v1955, %v1957
          %v1959 = vrot.slane %v1952, %v1958
          %v1960 = vcombine.low %v1948, %v1949
          %v1962 = vunpack.c.l.s4 1983009808
          %v1963 = vunpack.c.0.s8 %v1962
          %v1964 = vlaneseq
          %v1965 = vshrl.u32 %v1964, 7
          %v1966 = vsub.s32 %v1963, %v1965
          %v1967 = vrot.slane %v1960, %v1966
          %v1968 = vcombine.low %v1940, %v1947
          %v1970 = vunpack.c.l.s4 1983009808
          %v1971 = vunpack.c.0.s8 %v1970
          %v1972 = vlaneseq
          %v1973 = vshrl.u32 %v1972, 7
          %v1974 = vsub.s32 %v1971, %v1973
          %v1975 = vrot.slane %v1968, %v1974
          %v1976 = vcombine.low %v1950, %v1951
          %v1978 = vunpack.c.l.s4 1983009808
          %v1979 = vunpack.c.0.s8 %v1978
          %v1980 = vlaneseq
          %v1981 = vshrl.u32 %v1980, 7
          %v1982 = vsub.s32 %v1979, %v1981
          %v1983 = vrot.slane %v1976, %v1982
          %v1984 = vcombine.low %v1959, %v1967
          %v1985 = vcombine.high %v1959, %v1967
          %v1987 = vunpack.c.l.s4 1934713408
          %v1988 = vunpack.c.0.s8 %v1987
          %v1989 = vlaneseq
          %v1990 = vshrl.u32 %v1989, 7
          %v1991 = vsub.s32 %v1988, %v1990
          %v1992 = vrot.slane %v1984, %v1991
          %v1994 = vunpack.c.l.s4 1934713408
          %v1995 = vunpack.c.0.s8 %v1994
          %v1996 = vlaneseq
          %v1997 = vshrl.u32 %v1996, 7
          %v1998 = vsub.s32 %v1995, %v1997
          %v1999 = vrot.slane %v1985, %v1998
          %v2000 = vcombine.low %v1975, %v1983
          %v2001 = vcombine.high %v1975, %v1983
          %v2003 = vunpack.c.l.s4 1934713408
          %v2004 = vunpack.c.0.s8 %v2003
          %v2005 = vlaneseq
          %v2006 = vshrl.u32 %v2005, 7
          %v2007 = vsub.s32 %v2004, %v2006
          %v2008 = vrot.slane %v2000, %v2007
          %v2010 = vunpack.c.l.s4 1934713408
          %v2011 = vunpack.c.0.s8 %v2010
          %v2012 = vlaneseq
          %v2013 = vshrl.u32 %v2012, 7
          %v2014 = vsub.s32 %v2011, %v2013
          %v2015 = vrot.slane %v2001, %v2014
          %v2016 = vcombine.low %v1992, %v2008
          %v2017 = vcombine.high %v1992, %v2008
          %v2018 = vcombine.low %v1999, %v2015
          %v2019 = vcombine.high %v1999, %v2015
          %2021 = vrot.lane.b32.xlu0 %v2017, 8
          %v2022 = vpop.permute.xlu0 %2021
          %2025 = vrot.lane.b32.xlu0 %v2018, 16
          %v2026 = vpop.permute.xlu0 %2025
          %2029 = vrot.lane.b32.xlu0 %v2019, 24
          %v2030 = vpop.permute.xlu0 %2029
          %v2032 = vsel %vm1338, %v2016, %v2022
          %vm2033 = vcmask 130048
          %v2034 = vsel %vm2033, %v2032, %v2026
          %vm2035 = vcmask 195584
          %v2036 = vsel %vm2035, %v2034, %v2030
          %v2037 = vpack.c.bf16 %v2036, %v2036
          %v2038 = vld [vmem:[#allocation18] sm:$0xf]
          %v2039 = vld [vmem:[#allocation18 + $0x4] sm:$0xf]
          %v2040 = vld [vmem:[#allocation18 + $0x8] sm:$0xf]
          %v2041 = vld [vmem:[#allocation18 + $0xc] sm:$0xf]
          %v2042 = vld [vmem:[#allocation20] sm:$0x1]
          %v2044 = vlaneseq
          %v2045 = vshrl.u32 %v2044, 7
          %v2046 = vsub.s32 0, %v2045
          %v2047 = vrot.slane %v2042, %v2046
          %v2053 = vunpack.c.l.b16 %v2038
          %v2054 = vunpack.c.l.b16 %v2039
          %v2055 = vunpack.c.l.b16 %v2040
          %v2056 = vunpack.c.l.b16 %v2041
          %v2057 = vpack.c.b16 %v2054, %v2053
          %v2058 = vpack.c.b16 %v2056, %v2055
          %v2062 = vsel %vm938, %v2037, 0
          %2064 = vmatprep.subr.bf16.mxu0 0
          %2065 = vmatpush1.bf16.msra.mxu0 %v2057
          %2066 = vmatprep.subr.bf16.mxu0 0
          %2067 = vmatpush1.bf16.msra.mxu0 %v2058
          %2068 = vmatprep.subr.bf16.mxu0 0
          %2069 = vmatpush1.bf16.msra.mxu0 0
          %2070 = vmatprep.subr.bf16.mxu0 0
          %2071 = vmatpush1.bf16.msra.mxu0 0
          %2072 = vmatprep.subr.bf16.mxu0 0
          %2073 = vmatpush1.bf16.msra.mxu0 0
          %2074 = vmatprep.subr.bf16.mxu0 0
          %2075 = vmatpush1.bf16.msra.mxu0 0
          %2076 = vmatprep.subr.bf16.mxu0 0
          %2077 = vmatpush1.bf16.msra.mxu0 0
          %2078 = vmatprep.subr.bf16.mxu0 0
          %2079 = vmatpush1.bf16.msra.mxu0 0
          %2080 = vmatprep.subr.bf16.mxu0 0
          %2081 = vmatpush1.bf16.msra.mxu0 0
          %2082 = vmatprep.subr.bf16.mxu0 0
          %2083 = vmatpush1.bf16.msra.mxu0 0
          %2084 = vmatprep.subr.bf16.mxu0 0
          %2085 = vmatpush1.bf16.msra.mxu0 0
          %2086 = vmatprep.subr.bf16.mxu0 0
          %2087 = vmatpush1.bf16.msra.mxu0 0
          %2088 = vmatprep.subr.bf16.mxu0 0
          %2089 = vmatpush1.bf16.msra.mxu0 0
          %2090 = vmatprep.subr.bf16.mxu0 0
          %2091 = vmatpush1.bf16.msra.mxu0 0
          %2092 = vmatprep.subr.bf16.mxu0 0
          %2093 = vmatpush1.bf16.msra.mxu0 0
          %2094 = vmatprep.subr.bf16.mxu0 0
          %2095 = vmatpush1.bf16.msra.mxu0 0
          %2096 = vmatprep.mubr.bf16.mxu0 0
          %2097 = vmatmul.mubr.bf16.gmra.mrb[0].mxu0 %v2062
          %v2098 = vpop.f32.mrb[0].mxu0
          %v2099 = vadd.f32 %v2047, %v2098
          %v2100 = vpop.f32.mrb[0].mxu0
          %v2101 = vpop.f32.mrb[0].mxu0
          %v2102 = vpop.f32.mrb[0].mxu0
          %2103 = vdwg.mxu0
          %v2104 = vld [vmem:[%s566] sm:$0xff]
          %v2105 = vadd.f32 %v2104, %v2099
          %v2106 = vld [vmem:[#allocation12] sm:$0x1]
          %v2107 = vld [vmem:[#allocation12 + $0x1] sm:$0x1]
          %v2108 = vsel %vm938, %v2105, 0.0
          %2109 = vadd.xlane.f32.xlu0 %v2108
          %v2110 = vpop.xlane.xlu0 %2109
          %v2111 = vmul.f32 %v2110, %v942
          %v2112 = vsub.f32 %v2105, %v2111
          %v2113 = vmul.f32 %v2112, %v2112
          %v2114 = vsel %vm938, %v2113, 0.0
          %2115 = vadd.xlane.f32.xlu0 %v2114
          %v2116 = vpop.xlane.xlu0 %2115
          %v2117 = vmul.f32 %v2116, %v942
          %v2118 = vadd.f32 %v2117, 1e-05
          %v2119 = vrsqrt.pop %v2118
          %v2120 = vmul.f32 %v2112, %v2119
          %v2121 = vlaneseq
          %v2122 = vshrl.u32 %v2121, 7
          %v2123 = vsub.s32 0, %v2122
          %v2124 = vrot.slane %v2106, %v2123
          %v2125 = vmul.f32 %v2120, %v2124
          %v2126 = vlaneseq
          %v2127 = vshrl.u32 %v2126, 7
          %v2128 = vsub.s32 0, %v2127
          %v2129 = vrot.slane %v2107, %v2128
          %v2130 = vadd.f32 %v2125, %v2129
          %v2131 = vpack.c.bf16 %v2130, %v2130
          %v2132 = vld [vmem:[#allocation21] sm:$0xf]
          %v2133 = vld [vmem:[#allocation21 + $0x4] sm:$0xf]
          %v2134 = vld [vmem:[#allocation21 + $0x8] sm:$0xf]
          %v2135 = vld [vmem:[#allocation21 + $0xc] sm:$0xf]
          %v2136 = vld [vmem:[#allocation23] sm:$0x1]
          %v2138 = vlaneseq
          %v2139 = vshrl.u32 %v2138, 7
          %v2140 = vsub.s32 0, %v2139
          %v2141 = vrot.slane %v2136, %v2140
          %v2147 = vunpack.c.l.b16 %v2132
          %v2148 = vunpack.c.l.b16 %v2133
          %v2149 = vunpack.c.l.b16 %v2134
          %v2150 = vunpack.c.l.b16 %v2135
          %v2151 = vpack.c.b16 %v2148, %v2147
          %v2152 = vpack.c.b16 %v2150, %v2149
          %v2156 = vsel %vm938, %v2131, 0
          %2158 = vmatprep.subr.bf16.mxu0 0
          %2159 = vmatpush1.bf16.msra.mxu0 %v2151
          %2160 = vmatprep.subr.bf16.mxu0 0
          %2161 = vmatpush1.bf16.msra.mxu0 %v2152
          %2162 = vmatprep.subr.bf16.mxu0 0
          %2163 = vmatpush1.bf16.msra.mxu0 0
          %2164 = vmatprep.subr.bf16.mxu0 0
          %2165 = vmatpush1.bf16.msra.mxu0 0
          %2166 = vmatprep.subr.bf16.mxu0 0
          %2167 = vmatpush1.bf16.msra.mxu0 0
          %2168 = vmatprep.subr.bf16.mxu0 0
          %2169 = vmatpush1.bf16.msra.mxu0 0
          %2170 = vmatprep.subr.bf16.mxu0 0
          %2171 = vmatpush1.bf16.msra.mxu0 0
          %2172 = vmatprep.subr.bf16.mxu0 0
          %2173 = vmatpush1.bf16.msra.mxu0 0
          %2174 = vmatprep.subr.bf16.mxu0 0
          %2175 = vmatpush1.bf16.msra.mxu0 0
          %2176 = vmatprep.subr.bf16.mxu0 0
          %2177 = vmatpush1.bf16.msra.mxu0 0
          %2178 = vmatprep.subr.bf16.mxu0 0
          %2179 = vmatpush1.bf16.msra.mxu0 0
          %2180 = vmatprep.subr.bf16.mxu0 0
          %2181 = vmatpush1.bf16.msra.mxu0 0
          %2182 = vmatprep.subr.bf16.mxu0 0
          %2183 = vmatpush1.bf16.msra.mxu0 0
          %2184 = vmatprep.subr.bf16.mxu0 0
          %2185 = vmatpush1.bf16.msra.mxu0 0
          %2186 = vmatprep.subr.bf16.mxu0 0
          %2187 = vmatpush1.bf16.msra.mxu0 0
          %2188 = vmatprep.subr.bf16.mxu0 0
          %2189 = vmatpush1.bf16.msra.mxu0 0
          %2190 = vmatprep.mubr.bf16.mxu0 0
          %2191 = vmatmul.mubr.bf16.gmra.mrb[0].mxu0 %v2156
          %v2192 = vpop.f32.mrb[0].mxu0
          %v2193 = vadd.f32 %v2141, %v2192
          %v2194 = vpop.f32.mrb[0].mxu0
          %v2195 = vpop.f32.mrb[0].mxu0
          %v2196 = vpop.f32.mrb[0].mxu0
          %2197 = vdwg.mxu0
          %v2198 = vmax.f32 %v2193, 0.0
          %v2199 = vpack.c.bf16 %v2198, %v2198
          %v2200 = vld [vmem:[#allocation24] sm:$0xf]
          %v2201 = vld [vmem:[#allocation24 + $0x4] sm:$0xf]
          %v2202 = vld [vmem:[#allocation24 + $0x8] sm:$0xf]
          %v2203 = vld [vmem:[#allocation24 + $0xc] sm:$0xf]
          %v2204 = vld [vmem:[#allocation24 + $0x10] sm:$0xf]
          %v2205 = vld [vmem:[#allocation24 + $0x14] sm:$0xf]
          %v2206 = vld [vmem:[#allocation24 + $0x18] sm:$0xf]
          %v2207 = vld [vmem:[#allocation24 + $0x1c] sm:$0xf]
          %v2208 = vld [vmem:[#allocation26] sm:$0x1]
          %v2210 = vlaneseq
          %v2211 = vshrl.u32 %v2210, 7
          %v2212 = vsub.s32 0, %v2211
          %v2213 = vrot.slane %v2208, %v2212
          %v2223 = vunpack.c.l.b16 %v2200
          %v2224 = vunpack.c.l.b16 %v2201
          %v2225 = vunpack.c.l.b16 %v2202
          %v2226 = vunpack.c.l.b16 %v2203
          %v2227 = vunpack.c.l.b16 %v2204
          %v2228 = vunpack.c.l.b16 %v2205
          %v2229 = vunpack.c.l.b16 %v2206
          %v2230 = vunpack.c.l.b16 %v2207
          %v2231 = vpack.c.b16 %v2224, %v2223
          %v2232 = vpack.c.b16 %v2226, %v2225
          %v2233 = vpack.c.b16 %v2228, %v2227
          %v2234 = vpack.c.b16 %v2230, %v2229
          %vm2239 = vcmask 523264
          %v2241 = vsel %vm2239, %v2199, 0
          %2243 = vmatprep.subr.bf16.mxu0 0
          %2244 = vmatpush1.bf16.msra.mxu0 %v2231
          %2245 = vmatprep.subr.bf16.mxu0 0
          %2246 = vmatpush1.bf16.msra.mxu0 %v2232
          %2247 = vmatprep.subr.bf16.mxu0 0
          %2248 = vmatpush1.bf16.msra.mxu0 %v2233
          %2249 = vmatprep.subr.bf16.mxu0 0
          %2250 = vmatpush1.bf16.msra.mxu0 %v2234
          %2251 = vmatprep.subr.bf16.mxu0 0
          %2252 = vmatpush1.bf16.msra.mxu0 0
          %2253 = vmatprep.subr.bf16.mxu0 0
          %2254 = vmatpush1.bf16.msra.mxu0 0
          %2255 = vmatprep.subr.bf16.mxu0 0
          %2256 = vmatpush1.bf16.msra.mxu0 0
          %2257 = vmatprep.subr.bf16.mxu0 0
          %2258 = vmatpush1.bf16.msra.mxu0 0
          %2259 = vmatprep.subr.bf16.mxu0 0
          %2260 = vmatpush1.bf16.msra.mxu0 0
          %2261 = vmatprep.subr.bf16.mxu0 0
          %2262 = vmatpush1.bf16.msra.mxu0 0
          %2263 = vmatprep.subr.bf16.mxu0 0
          %2264 = vmatpush1.bf16.msra.mxu0 0
          %2265 = vmatprep.subr.bf16.mxu0 0
          %2266 = vmatpush1.bf16.msra.mxu0 0
          %2267 = vmatprep.subr.bf16.mxu0 0
          %2268 = vmatpush1.bf16.msra.mxu0 0
          %2269 = vmatprep.subr.bf16.mxu0 0
          %2270 = vmatpush1.bf16.msra.mxu0 0
          %2271 = vmatprep.subr.bf16.mxu0 0
          %2272 = vmatpush1.bf16.msra.mxu0 0
          %2273 = vmatprep.subr.bf16.mxu0 0
          %2274 = vmatpush1.bf16.msra.mxu0 0
          %2275 = vmatprep.mubr.bf16.mxu0 0
          %2276 = vmatmul.mubr.bf16.gmra.mrb[0].mxu0 %v2241
          %v2277 = vpop.f32.mrb[0].mxu0
          %v2278 = vadd.f32 %v2213, %v2277
          %v2279 = vpop.f32.mrb[0].mxu0
          %v2280 = vpop.f32.mrb[0].mxu0
          %v2281 = vpop.f32.mrb[0].mxu0
          %2282 = vdwg.mxu0
          %v2283 = vadd.f32 %v2105, %v2278
          %2284 = vst.msk [vmem:[%s666] sm:$0xff] %vm938, %v2283
        $region132: #{tpu_custom_call.1} parent=71 // pred_fallthru
          _
        %s2285 = sand.u32 %s354, 1
        %s2286 = scalar_lea.sflag [#allocation8], %s2285
        %s2287 = sand.u32 %s354, 1
        %s2288 = smul.addr %s2287, 8
        %s2289 = scalar_lea.vmem [#allocation27], %s2288
        // Predicated region
        $region133: #{tpu_custom_call.1} parent=71 // pred_check
          %p2290 = pneg %p364
        $region134: #{tpu_custom_call.1} parent=71 // pred_check_branch
          %2292 = sbr.rel (%p2290) target = $region136
        $region135: #{tpu_custom_call.1} parent=71 // pred_region
          %s2294 = ssub.s32 128, 128
          %2295 = vsyncadd %s2286, %s2294
          %s2296 = sadd.s32 %s44, %s43
          %s2297 = smul.addr %s2296, 128
          %s2298 = scalar_lea.hbm %s13, %s2297
          %s2300 = sshll.u32 %s2289, 4
          %s2301 = int_to_ptr.vmem [resolvable:$true] %s2300
          %2303 = dma.vmem_to_hbm [thread:$0]  %s2301, 128, %s2298, %s2286
        $region136: #{tpu_custom_call.1} parent=71 // pred_fallthru
          _
      $region72: #{tpu_custom_call.1} parent=5 // pred_fallthru
        _
      %p2304 = scmp.le.s32.totalorder 2, %s33
      // Predicated region
      $region137: #{tpu_custom_call.1} parent=5 // pred_check
        %p2305 = pneg %p2304
      $region138: #{tpu_custom_call.1} parent=5 // pred_check_branch
        %2307 = sbr.rel (%p2305) target = $region140
      $region139: #{tpu_custom_call.1} parent=5 // pred_region
        %s2308 = ssub.s32 %s33, 2
        // Predicated region
        $region141: #{tpu_custom_call.1} parent=139 // pred_check
          %p2309 = pneg %p370
        $region142: #{tpu_custom_call.1} parent=139 // pred_check_branch
          %2311 = sbr.rel (%p2309) target = $region144
        $region143: #{tpu_custom_call.1} parent=139 // pred_region
          %s2312 = sand.u32 %s355, 1
          %s2313 = scalar_lea.sflag [#allocation8], %s2312
          %s2314 = sand.u32 %s355, 1
          %s2315 = smul.addr %s2314, 8
          %s2316 = scalar_lea.vmem [#allocation27], %s2315
          %2317 = dma.done %s2313, 128
        $region144: #{tpu_custom_call.1} parent=139 // pred_fallthru
          _
      $region140: #{tpu_custom_call.1} parent=5 // pred_fallthru
        _
    $region6: #{tpu_custom_call.1} parent=1 // loop_footer
      %s37 = sadd.s32 1, %s33
    $region7: #{tpu_custom_call.1} parent=1 // loop_footer_branch
      %32 = sbr.rel target = $region3
    $region8: #{tpu_custom_call.1} parent=1 // loop_exit
      _
    %2318 = vsyncpa [#allocation7], 1
    %s2319 = scalar_lea.sflag [#allocation7], 1
    %2320 = vsyncpa %s2319, 1
    %2321 = vsyncpa [#allocation10], 1
    %s2322 = scalar_lea.sflag [#allocation10], 1
    %2323 = vsyncpa %s2322, 1
    %2324 = vsyncpa [#allocation13], 1
    %2325 = vsyncpa [#allocation16], 1
    %2326 = vsyncpa [#allocation19], 1
    %2327 = vsyncpa [#allocation22], 1
    %2328 = vsyncpa [#allocation25], 1
    %2329 = vsyncpa [#allocation8], 1
    %s2330 = scalar_lea.sflag [#allocation8], 1
    %2331 = vsyncpa %s2330, 1

</llo_original>
